<compile_context>
chip_gen: v7x
topology: tpu7x:2x2x1
jax: 0.10.0
libtpu: 0.0.40
codegen_flags: <defaults>
</compile_context>

<pallas_src>
import numpy as np
import jax
import jax.numpy as jnp
from jax.experimental import pallas as pl
from jax.experimental.pallas import tpu as pltpu

F32 = jnp.float32
EPS = 1e-5


# ----------------------------- Pallas kernel -------------------------------- #

def _roll_lanes(a, shift, m):
    """Circular shift along the last axis: out[:, i] = a[:, (i + shift) % m]."""
    t = shift % m
    if t == 0:
        return a
    return jnp.concatenate([a[:, t:], a[:, :t]], axis=1)


def _make_resblock_kernel(cin, cout, ho, wo):
    m1 = ho * wo
    offsets = [(dy, dx) for dy in (-1, 0, 1) for dx in (-1, 0, 1)]

    def prelu(y, alpha):
        return jnp.where(y > 0, y, alpha * y)

    def conv3x3(a, w_ref, mask_ref):
        """3x3 conv, pad=1, on flattened (cout, Ho*Wo) activations.

        For each tap (dy, dx): roll the flattened spatial axis by dy*Wo+dx, zero the
        positions whose source pixel falls outside the image (mask), and accumulate
        W[dy,dx] @ tap into an f32 accumulator.  No HBM im2col, no VMEM padding copy.
        """
        acc = jnp.zeros((cout, m1), jnp.float32)
        for k, (dy, dx) in enumerate(offsets):
            tap = _roll_lanes(a, dy * wo + dx, m1)
            if (dy, dx) != (0, 0):
                tap = tap * mask_ref[k]          # (1, m1) broadcast over channels
            acc = acc + jnp.dot(w_ref[k], tap, preferred_element_type=jnp.float32)
        return acc

    def kernel(x_ref, wcat_ref, bcat_ref, acat_ref,
               w1_ref, b1_ref, a1_ref,
               w2_ref, b2_ref, a2_ref,
               mask_ref, o_ref):
        # Stage 1: fused main + residual 1x1 stride conv (BN folded), bias + PReLU.
        y = jnp.dot(wcat_ref[...], x_ref[...], preferred_element_type=jnp.float32)
        y = prelu(y + bcat_ref[...], acat_ref[...])
        a0 = y[:cout, :]         # main path          (cout, m1)
        res = y[cout:, :]        # residual shortcut  (cout, m1)

        # Stage 2 / 3: DoubleConv (two 3x3 convs) entirely in VMEM.
        h1 = prelu(conv3x3(a0, w1_ref, mask_ref) + b1_ref[...], a1_ref[...])
        h2 = prelu(conv3x3(h1, w2_ref, mask_ref) + b2_ref[...], a2_ref[...])

        # Residual add fused into the epilogue.
        o_ref[...] = (h2 + res).astype(o_ref.dtype)

    return kernel


# ----------------------------- JAX glue ------------------------------------- #

def _fold_bn(p):
    """Fold BatchNorm(eval) into the conv. Returns (w_scaled(OIHW), b(C,1), alpha(C,1))."""
    w = p["w"]                                   # (Cout, Cin, kh, kw)
    cout = w.shape[0]
    scale = p["bn_gamma"] / jnp.sqrt(p["bn_var"] + EPS)
    shift = p["bn_beta"] - p["bn_mean"] * scale
    w_scaled = w * scale[:, None, None, None]
    b = (p["b"] * scale + shift)[:, None]
    alpha = jnp.broadcast_to(p["prelu"].reshape(-1)[0], (cout,))[:, None]
    return w_scaled, b, alpha


def _tap_masks(ho, wo):
    """(9, 1, Ho*Wo) f32 validity masks for the 9 taps of a padded 3x3 conv."""
    m1 = ho * wo
    rows = np.arange(m1) // wo
    cols = np.arange(m1) % wo
    masks = np.zeros((9, 1, m1), np.float32)
    k = 0
    for dy in (-1, 0, 1):
        for dx in (-1, 0, 1):
            valid = ((rows + dy >= 0) & (rows + dy < ho) &
                     (cols + dx >= 0) & (cols + dx < wo))
            masks[k, 0, :] = valid.astype(np.float32)
            k += 1
    return jnp.asarray(masks)


def _rep_spec(shape):
    nd = len(shape)
    return pl.BlockSpec(shape, lambda i, _nd=nd: (0,) * _nd)


def resblock_forward(x_nchw, params, stride=2):
    n, cin, h, w = x_nchw.shape
    cout = params["conv_stride"]["w"].shape[0]

    # Stride-2 subsample of the 1x1 stride conv (one small wrapper-side copy).
    xs = x_nchw[:, :, ::stride, ::stride]                    # (N, Cin, Ho, Wo)
    ho, wo = xs.shape[2], xs.shape[3]
    m1 = ho * wo
    xs = xs.reshape(n, cin, m1)                              # free reshape

    # BN-folded weights.  Main + residual 1x1 convs fused into one matmul.
    w_cs, b_cs, a_cs = _fold_bn(params["conv_stride"])
    w_rs, b_rs, a_rs = _fold_bn(params["residual_conv"])
    w_cat = jnp.concatenate([w_cs.reshape(cout, cin),
                             w_rs.reshape(cout, cin)], axis=0)      # (2*Cout, Cin)
    b_cat = jnp.concatenate([b_cs, b_rs], axis=0)
    a_cat = jnp.concatenate([a_cs, a_rs], axis=0)

    def as_taps(wc):                                         # (Cout,Cin,3,3) -> (9,Cout,Cin)
        return jnp.transpose(wc, (2, 3, 0, 1)).reshape(9, cout, wc.shape[1])

    w1, b1, a1 = _fold_bn(params["dc1"])
    w2, b2, a2 = _fold_bn(params["dc2"])
    w1, w2 = as_taps(w1), as_taps(w2)

    masks = _tap_masks(ho, wo)
    kernel = _make_resblock_kernel(cin, cout, ho, wo)

    in_specs = [
        pl.BlockSpec((None, cin, m1), lambda i: (i, 0, 0)),  # xs (one image / step)
        _rep_spec((2 * cout, cin)),                          # w_cat
        _rep_spec((2 * cout, 1)),                            # b_cat
        _rep_spec((2 * cout, 1)),                            # a_cat
        _rep_spec((9, cout, cout)),                          # w1 taps
        _rep_spec((cout, 1)),                                # b1
        _rep_spec((cout, 1)),                                # a1
        _rep_spec((9, cout, cout)),                          # w2 taps
        _rep_spec((cout, 1)),                                # b2
        _rep_spec((cout, 1)),                                # a2
        _rep_spec((9, 1, m1)),                               # tap masks
    ]

    out = pl.pallas_call(
        kernel,
        out_shape=jax.ShapeDtypeStruct((n, cout, m1), F32),
        grid=(n,),
        in_specs=in_specs,
        out_specs=pl.BlockSpec((None, cout, m1), lambda i: (i, 0, 0)),
        compiler_params=pltpu.CompilerParams(
            dimension_semantics=("parallel",),
            vmem_limit_bytes=48 * 1024 * 1024),
    )(xs, w_cat, b_cat, a_cat, w1, b1, a1, w2, b2, a2, masks)

    return out.reshape(n, cout, ho, wo)


# ----------------------------- parameter init ------------------------------- #

def _conv_bn_prelu_params(key, cout, cin, ksz):
    k1, k2, k3, k4, k5, k6 = jax.random.split(key, 6)
    return {
        "w": 0.2 * jax.random.normal(k1, (cout, cin, ksz, ksz), F32),
        "b": 0.1 * jax.random.normal(k2, (cout,), F32),
        "bn_gamma": 1.0 + 0.1 * jax.random.normal(k3, (cout,), F32),
        "bn_beta": 0.1 * jax.random.normal(k4, (cout,), F32),
        "bn_mean": 0.1 * jax.random.normal(k5, (cout,), F32),
        "bn_var": 1.0 + 0.1 * jax.random.uniform(k6, (cout,), F32),
        "prelu": jnp.array([0.25], F32),   # nn.PReLU() default (single shared slope)
    }


def init_resblock_params(key, in_ch, out_ch):
    k1, k2, k3, k4 = jax.random.split(key, 4)
    return {
        "conv_stride": _conv_bn_prelu_params(k1, out_ch, in_ch, 1),
        "residual_conv": _conv_bn_prelu_params(k2, out_ch, in_ch, 1),
        "dc1": _conv_bn_prelu_params(k3, out_ch, out_ch, 3),
        "dc2": _conv_bn_prelu_params(k4, out_ch, out_ch, 3),
    }


# ----------------------------- pure-JAX reference ---------------------------- #

def _conv2d_ref(x, w, b, stride, padding):
    y = jax.lax.conv_general_dilated(
        x, w, (stride, stride), ((padding, padding), (padding, padding)),
        dimension_numbers=("NCHW", "OIHW", "NCHW"))
    return y + b[None, :, None, None]


def _bn_prelu_ref(x, p):
    scale = p["bn_gamma"] / jnp.sqrt(p["bn_var"] + EPS)
    shift = p["bn_beta"] - p["bn_mean"] * scale
    y = x * scale[None, :, None, None] + shift[None, :, None, None]
    return jnp.where(y > 0, y, p["prelu"][0] * y)


def resblock_ref(x, params, stride=2):
    def conv_stride_ref(x, p):
        return _bn_prelu_ref(_conv2d_ref(x, p["w"], p["b"], stride, 0), p)

    def conv3_ref(x, p):
        return _bn_prelu_ref(_conv2d_ref(x, p["w"], p["b"], 1, 1), p)

    residual = conv_stride_ref(x, params["residual_conv"])
    out = conv_stride_ref(x, params["conv_stride"])
    out = conv3_ref(out, params["dc1"])
    out = conv3_ref(out, params["dc2"])
    return out + residual


# ----------------------------- main ------------------------------------------ #

if __name__ == "__main__":
    key = jax.random.PRNGKey(0)
    kx, kp = jax.random.split(key)

    N, Cin, H, W = 2, 4, 16, 16
    Cout, stride = 8, 2

    x = jax.random.normal(kx, (N, Cin, H, W), F32)           # NCHW like PyTorch
    params = init_resblock_params(kp, Cin, Cout)

    out = resblock_forward(x, params, stride=stride)
    out = jax.block_until_ready(out)

    ref = jax.block_until_ready(resblock_ref(x, params, stride=stride))

    assert out.shape == (N, Cout, H // stride, W // stride), out.shape
    assert jnp.allclose(out, ref, atol=1e-3, rtol=1e-3), (
        float(jnp.max(jnp.abs(out - ref))))

    print("KERNEL_OK")
</pallas_src>

<mosaic_0001>
module attributes {stable_mosaic.version = 11 : i64} {
  func.func @kernel(%arg0: i32, %arg1: memref<1x4x64xf32, #tpu.memory_space<vmem>>, %arg2: memref<16x4xf32, #tpu.memory_space<vmem>>, %arg3: memref<16x1xf32, #tpu.memory_space<vmem>>, %arg4: memref<16x1xf32, #tpu.memory_space<vmem>>, %arg5: memref<9x8x8xf32, #tpu.memory_space<vmem>>, %arg6: memref<8x1xf32, #tpu.memory_space<vmem>>, %arg7: memref<8x1xf32, #tpu.memory_space<vmem>>, %arg8: memref<9x8x8xf32, #tpu.memory_space<vmem>>, %arg9: memref<8x1xf32, #tpu.memory_space<vmem>>, %arg10: memref<8x1xf32, #tpu.memory_space<vmem>>, %arg11: memref<9x1x64xf32, #tpu.memory_space<vmem>>, %arg12: memref<1x8x64xf32, #tpu.memory_space<vmem>>) attributes {dimension_semantics = [#tpu.dimension_semantics<parallel>], iteration_bounds = array<i64: 2>, scalar_prefetch = 0 : i64, scratch_operands = 0 : i64, tpu.core_type = #tpu.core_type<tc>, window_params = [{transform_indices = @transform_0, window_bounds = array<i64: 1, 4, 64>}, {pipeline_mode = #tpu.pipeline_mode<synchronous>, transform_indices = @transform_1, window_bounds = array<i64: 16, 4>}, {pipeline_mode = #tpu.pipeline_mode<synchronous>, transform_indices = @transform_2, window_bounds = array<i64: 16, 1>}, {pipeline_mode = #tpu.pipeline_mode<synchronous>, transform_indices = @transform_3, window_bounds = array<i64: 16, 1>}, {pipeline_mode = #tpu.pipeline_mode<synchronous>, transform_indices = @transform_4, window_bounds = array<i64: 9, 8, 8>}, {pipeline_mode = #tpu.pipeline_mode<synchronous>, transform_indices = @transform_5, window_bounds = array<i64: 8, 1>}, {pipeline_mode = #tpu.pipeline_mode<synchronous>, transform_indices = @transform_6, window_bounds = array<i64: 8, 1>}, {pipeline_mode = #tpu.pipeline_mode<synchronous>, transform_indices = @transform_7, window_bounds = array<i64: 9, 8, 8>}, {pipeline_mode = #tpu.pipeline_mode<synchronous>, transform_indices = @transform_8, window_bounds = array<i64: 8, 1>}, {pipeline_mode = #tpu.pipeline_mode<synchronous>, transform_indices = @transform_9, window_bounds = array<i64: 8, 1>}, {pipeline_mode = #tpu.pipeline_mode<synchronous>, transform_indices = @transform_10, window_bounds = array<i64: 9, 1, 64>}, {transform_indices = @transform_11, window_bounds = array<i64: 1, 8, 64>}]} {
    %c0 = arith.constant 0 : index
    %c0_0 = arith.constant 0 : index
    %0 = vector.load %arg2[%c0, %c0_0] : memref<16x4xf32, #tpu.memory_space<vmem>>, vector<16x4xf32>
    %c0_1 = arith.constant 0 : index
    %c0_2 = arith.constant 0 : index
    %c0_3 = arith.constant 0 : index
    %1 = vector.load %arg1[%c0_1, %c0_2, %c0_3] : memref<1x4x64xf32, #tpu.memory_space<vmem>>, vector<1x4x64xf32>
    %2 = vector.shape_cast %1 : vector<1x4x64xf32> to vector<4x64xf32>
    %cst = arith.constant dense<0.000000e+00> : vector<16x64xf32>
    %3 = tpu.matmul %0, %2, %cst {dimension_numbers = #tpu.dot_dimension_numbers<[1], [0], [0], [1], [0, 0, 1, 1], [], []>} : vector<16x4xf32>, vector<4x64xf32>, vector<16x64xf32> -> vector<16x64xf32>
    %c0_4 = arith.constant 0 : index
    %c0_5 = arith.constant 0 : index
    %4 = vector.load %arg3[%c0_4, %c0_5] : memref<16x1xf32, #tpu.memory_space<vmem>>, vector<16x1xf32>
    %5 = vector.broadcast %4 : vector<16x1xf32> to vector<16x64xf32>
    %6 = arith.addf %3, %5 : vector<16x64xf32>
    %c0_6 = arith.constant 0 : index
    %c0_7 = arith.constant 0 : index
    %7 = vector.load %arg4[%c0_6, %c0_7] : memref<16x1xf32, #tpu.memory_space<vmem>>, vector<16x1xf32>
    %cst_8 = arith.constant 0.000000e+00 : f32
    %8 = vector.broadcast %cst_8 : f32 to vector<16x64xf32>
    %9 = arith.cmpf ogt, %6, %8 : vector<16x64xf32>
    %10 = vector.broadcast %7 : vector<16x1xf32> to vector<16x64xf32>
    %11 = arith.mulf %10, %6 : vector<16x64xf32>
    %12 = arith.select %9, %6, %11 : vector<16x64xi1>, vector<16x64xf32>
    %13 = vector.extract_strided_slice %12 {offsets = [0, 0], sizes = [8, 64], strides = [1, 1]} : vector<16x64xf32> to vector<8x64xf32>
    %14 = vector.extract_strided_slice %12 {offsets = [8, 0], sizes = [8, 64], strides = [1, 1]} : vector<16x64xf32> to vector<8x64xf32>
    %cst_9 = arith.constant 0.000000e+00 : f32
    %15 = vector.broadcast %cst_9 : f32 to vector<8x64xf32>
    %16 = vector.extract_strided_slice %13 {offsets = [0, 55], sizes = [8, 9], strides = [1, 1]} : vector<8x64xf32> to vector<8x9xf32>
    %17 = vector.extract_strided_slice %13 {offsets = [0, 0], sizes = [8, 55], strides = [1, 1]} : vector<8x64xf32> to vector<8x55xf32>
    %18 = tpu.concatenate %16, %17 in 1 : vector<8x9xf32>, vector<8x55xf32> -> vector<8x64xf32>
    %c0_10 = arith.constant 0 : index
    %c0_11 = arith.constant 0 : index
    %c0_12 = arith.constant 0 : index
    %19 = vector.load %arg11[%c0_10, %c0_11, %c0_12] : memref<9x1x64xf32, #tpu.memory_space<vmem>>, vector<1x1x64xf32>
    %20 = vector.shape_cast %19 : vector<1x1x64xf32> to vector<1x64xf32>
    %21 = vector.broadcast %20 : vector<1x64xf32> to vector<8x64xf32>
    %22 = arith.mulf %18, %21 : vector<8x64xf32>
    %c0_13 = arith.constant 0 : index
    %c0_14 = arith.constant 0 : index
    %c0_15 = arith.constant 0 : index
    %23 = vector.load %arg5[%c0_13, %c0_14, %c0_15] : memref<9x8x8xf32, #tpu.memory_space<vmem>>, vector<1x8x8xf32>
    %24 = vector.shape_cast %23 : vector<1x8x8xf32> to vector<8x8xf32>
    %cst_16 = arith.constant dense<0.000000e+00> : vector<8x64xf32>
    %25 = tpu.matmul %24, %22, %cst_16 {dimension_numbers = #tpu.dot_dimension_numbers<[1], [0], [0], [1], [0, 0, 1, 1], [], []>} : vector<8x8xf32>, vector<8x64xf32>, vector<8x64xf32> -> vector<8x64xf32>
    %26 = arith.addf %15, %25 : vector<8x64xf32>
    %27 = vector.extract_strided_slice %13 {offsets = [0, 56], sizes = [8, 8], strides = [1, 1]} : vector<8x64xf32> to vector<8x8xf32>
    %28 = vector.extract_strided_slice %13 {offsets = [0, 0], sizes = [8, 56], strides = [1, 1]} : vector<8x64xf32> to vector<8x56xf32>
    %29 = tpu.concatenate %27, %28 in 1 : vector<8x8xf32>, vector<8x56xf32> -> vector<8x64xf32>
    %c1 = arith.constant 1 : index
    %c0_17 = arith.constant 0 : index
    %c0_18 = arith.constant 0 : index
    %30 = vector.load %arg11[%c1, %c0_17, %c0_18] : memref<9x1x64xf32, #tpu.memory_space<vmem>>, vector<1x1x64xf32>
    %31 = vector.shape_cast %30 : vector<1x1x64xf32> to vector<1x64xf32>
    %32 = vector.broadcast %31 : vector<1x64xf32> to vector<8x64xf32>
    %33 = arith.mulf %29, %32 : vector<8x64xf32>
    %c1_19 = arith.constant 1 : index
    %c0_20 = arith.constant 0 : index
    %c0_21 = arith.constant 0 : index
    %34 = vector.load %arg5[%c1_19, %c0_20, %c0_21] : memref<9x8x8xf32, #tpu.memory_space<vmem>>, vector<1x8x8xf32>
    %35 = vector.shape_cast %34 : vector<1x8x8xf32> to vector<8x8xf32>
    %cst_22 = arith.constant dense<0.000000e+00> : vector<8x64xf32>
    %36 = tpu.matmul %35, %33, %cst_22 {dimension_numbers = #tpu.dot_dimension_numbers<[1], [0], [0], [1], [0, 0, 1, 1], [], []>} : vector<8x8xf32>, vector<8x64xf32>, vector<8x64xf32> -> vector<8x64xf32>
    %37 = arith.addf %26, %36 : vector<8x64xf32>
    %38 = vector.extract_strided_slice %13 {offsets = [0, 57], sizes = [8, 7], strides = [1, 1]} : vector<8x64xf32> to vector<8x7xf32>
    %39 = vector.extract_strided_slice %13 {offsets = [0, 0], sizes = [8, 57], strides = [1, 1]} : vector<8x64xf32> to vector<8x57xf32>
    %40 = tpu.concatenate %38, %39 in 1 : vector<8x7xf32>, vector<8x57xf32> -> vector<8x64xf32>
    %c2 = arith.constant 2 : index
    %c0_23 = arith.constant 0 : index
    %c0_24 = arith.constant 0 : index
    %41 = vector.load %arg11[%c2, %c0_23, %c0_24] : memref<9x1x64xf32, #tpu.memory_space<vmem>>, vector<1x1x64xf32>
    %42 = vector.shape_cast %41 : vector<1x1x64xf32> to vector<1x64xf32>
    %43 = vector.broadcast %42 : vector<1x64xf32> to vector<8x64xf32>
    %44 = arith.mulf %40, %43 : vector<8x64xf32>
    %c2_25 = arith.constant 2 : index
    %c0_26 = arith.constant 0 : index
    %c0_27 = arith.constant 0 : index
    %45 = vector.load %arg5[%c2_25, %c0_26, %c0_27] : memref<9x8x8xf32, #tpu.memory_space<vmem>>, vector<1x8x8xf32>
    %46 = vector.shape_cast %45 : vector<1x8x8xf32> to vector<8x8xf32>
    %cst_28 = arith.constant dense<0.000000e+00> : vector<8x64xf32>
    %47 = tpu.matmul %46, %44, %cst_28 {dimension_numbers = #tpu.dot_dimension_numbers<[1], [0], [0], [1], [0, 0, 1, 1], [], []>} : vector<8x8xf32>, vector<8x64xf32>, vector<8x64xf32> -> vector<8x64xf32>
    %48 = arith.addf %37, %47 : vector<8x64xf32>
    %49 = vector.extract_strided_slice %13 {offsets = [0, 63], sizes = [8, 1], strides = [1, 1]} : vector<8x64xf32> to vector<8x1xf32>
    %50 = vector.extract_strided_slice %13 {offsets = [0, 0], sizes = [8, 63], strides = [1, 1]} : vector<8x64xf32> to vector<8x63xf32>
    %51 = tpu.concatenate %49, %50 in 1 : vector<8x1xf32>, vector<8x63xf32> -> vector<8x64xf32>
    %c3 = arith.constant 3 : index
    %c0_29 = arith.constant 0 : index
    %c0_30 = arith.constant 0 : index
    %52 = vector.load %arg11[%c3, %c0_29, %c0_30] : memref<9x1x64xf32, #tpu.memory_space<vmem>>, vector<1x1x64xf32>
    %53 = vector.shape_cast %52 : vector<1x1x64xf32> to vector<1x64xf32>
    %54 = vector.broadcast %53 : vector<1x64xf32> to vector<8x64xf32>
    %55 = arith.mulf %51, %54 : vector<8x64xf32>
    %c3_31 = arith.constant 3 : index
    %c0_32 = arith.constant 0 : index
    %c0_33 = arith.constant 0 : index
    %56 = vector.load %arg5[%c3_31, %c0_32, %c0_33] : memref<9x8x8xf32, #tpu.memory_space<vmem>>, vector<1x8x8xf32>
    %57 = vector.shape_cast %56 : vector<1x8x8xf32> to vector<8x8xf32>
    %cst_34 = arith.constant dense<0.000000e+00> : vector<8x64xf32>
    %58 = tpu.matmul %57, %55, %cst_34 {dimension_numbers = #tpu.dot_dimension_numbers<[1], [0], [0], [1], [0, 0, 1, 1], [], []>} : vector<8x8xf32>, vector<8x64xf32>, vector<8x64xf32> -> vector<8x64xf32>
    %59 = arith.addf %48, %58 : vector<8x64xf32>
    %c4 = arith.constant 4 : index
    %c0_35 = arith.constant 0 : index
    %c0_36 = arith.constant 0 : index
    %60 = vector.load %arg5[%c4, %c0_35, %c0_36] : memref<9x8x8xf32, #tpu.memory_space<vmem>>, vector<1x8x8xf32>
    %61 = vector.shape_cast %60 : vector<1x8x8xf32> to vector<8x8xf32>
    %cst_37 = arith.constant dense<0.000000e+00> : vector<8x64xf32>
    %62 = tpu.matmul %61, %13, %cst_37 {dimension_numbers = #tpu.dot_dimension_numbers<[1], [0], [0], [1], [0, 0, 1, 1], [], []>} : vector<8x8xf32>, vector<8x64xf32>, vector<8x64xf32> -> vector<8x64xf32>
    %63 = arith.addf %59, %62 : vector<8x64xf32>
    %64 = vector.extract_strided_slice %13 {offsets = [0, 1], sizes = [8, 63], strides = [1, 1]} : vector<8x64xf32> to vector<8x63xf32>
    %65 = vector.extract_strided_slice %13 {offsets = [0, 0], sizes = [8, 1], strides = [1, 1]} : vector<8x64xf32> to vector<8x1xf32>
    %66 = tpu.concatenate %64, %65 in 1 : vector<8x63xf32>, vector<8x1xf32> -> vector<8x64xf32>
    %c5 = arith.constant 5 : index
    %c0_38 = arith.constant 0 : index
    %c0_39 = arith.constant 0 : index
    %67 = vector.load %arg11[%c5, %c0_38, %c0_39] : memref<9x1x64xf32, #tpu.memory_space<vmem>>, vector<1x1x64xf32>
    %68 = vector.shape_cast %67 : vector<1x1x64xf32> to vector<1x64xf32>
    %69 = vector.broadcast %68 : vector<1x64xf32> to vector<8x64xf32>
    %70 = arith.mulf %66, %69 : vector<8x64xf32>
    %c5_40 = arith.constant 5 : index
    %c0_41 = arith.constant 0 : index
    %c0_42 = arith.constant 0 : index
    %71 = vector.load %arg5[%c5_40, %c0_41, %c0_42] : memref<9x8x8xf32, #tpu.memory_space<vmem>>, vector<1x8x8xf32>
    %72 = vector.shape_cast %71 : vector<1x8x8xf32> to vector<8x8xf32>
    %cst_43 = arith.constant dense<0.000000e+00> : vector<8x64xf32>
    %73 = tpu.matmul %72, %70, %cst_43 {dimension_numbers = #tpu.dot_dimension_numbers<[1], [0], [0], [1], [0, 0, 1, 1], [], []>} : vector<8x8xf32>, vector<8x64xf32>, vector<8x64xf32> -> vector<8x64xf32>
    %74 = arith.addf %63, %73 : vector<8x64xf32>
    %75 = vector.extract_strided_slice %13 {offsets = [0, 7], sizes = [8, 57], strides = [1, 1]} : vector<8x64xf32> to vector<8x57xf32>
    %76 = vector.extract_strided_slice %13 {offsets = [0, 0], sizes = [8, 7], strides = [1, 1]} : vector<8x64xf32> to vector<8x7xf32>
    %77 = tpu.concatenate %75, %76 in 1 : vector<8x57xf32>, vector<8x7xf32> -> vector<8x64xf32>
    %c6 = arith.constant 6 : index
    %c0_44 = arith.constant 0 : index
    %c0_45 = arith.constant 0 : index
    %78 = vector.load %arg11[%c6, %c0_44, %c0_45] : memref<9x1x64xf32, #tpu.memory_space<vmem>>, vector<1x1x64xf32>
    %79 = vector.shape_cast %78 : vector<1x1x64xf32> to vector<1x64xf32>
    %80 = vector.broadcast %79 : vector<1x64xf32> to vector<8x64xf32>
    %81 = arith.mulf %77, %80 : vector<8x64xf32>
    %c6_46 = arith.constant 6 : index
    %c0_47 = arith.constant 0 : index
    %c0_48 = arith.constant 0 : index
    %82 = vector.load %arg5[%c6_46, %c0_47, %c0_48] : memref<9x8x8xf32, #tpu.memory_space<vmem>>, vector<1x8x8xf32>
    %83 = vector.shape_cast %82 : vector<1x8x8xf32> to vector<8x8xf32>
    %cst_49 = arith.constant dense<0.000000e+00> : vector<8x64xf32>
    %84 = tpu.matmul %83, %81, %cst_49 {dimension_numbers = #tpu.dot_dimension_numbers<[1], [0], [0], [1], [0, 0, 1, 1], [], []>} : vector<8x8xf32>, vector<8x64xf32>, vector<8x64xf32> -> vector<8x64xf32>
    %85 = arith.addf %74, %84 : vector<8x64xf32>
    %86 = vector.extract_strided_slice %13 {offsets = [0, 8], sizes = [8, 56], strides = [1, 1]} : vector<8x64xf32> to vector<8x56xf32>
    %87 = vector.extract_strided_slice %13 {offsets = [0, 0], sizes = [8, 8], strides = [1, 1]} : vector<8x64xf32> to vector<8x8xf32>
    %88 = tpu.concatenate %86, %87 in 1 : vector<8x56xf32>, vector<8x8xf32> -> vector<8x64xf32>
    %c7 = arith.constant 7 : index
    %c0_50 = arith.constant 0 : index
    %c0_51 = arith.constant 0 : index
    %89 = vector.load %arg11[%c7, %c0_50, %c0_51] : memref<9x1x64xf32, #tpu.memory_space<vmem>>, vector<1x1x64xf32>
    %90 = vector.shape_cast %89 : vector<1x1x64xf32> to vector<1x64xf32>
    %91 = vector.broadcast %90 : vector<1x64xf32> to vector<8x64xf32>
    %92 = arith.mulf %88, %91 : vector<8x64xf32>
    %c7_52 = arith.constant 7 : index
    %c0_53 = arith.constant 0 : index
    %c0_54 = arith.constant 0 : index
    %93 = vector.load %arg5[%c7_52, %c0_53, %c0_54] : memref<9x8x8xf32, #tpu.memory_space<vmem>>, vector<1x8x8xf32>
    %94 = vector.shape_cast %93 : vector<1x8x8xf32> to vector<8x8xf32>
    %cst_55 = arith.constant dense<0.000000e+00> : vector<8x64xf32>
    %95 = tpu.matmul %94, %92, %cst_55 {dimension_numbers = #tpu.dot_dimension_numbers<[1], [0], [0], [1], [0, 0, 1, 1], [], []>} : vector<8x8xf32>, vector<8x64xf32>, vector<8x64xf32> -> vector<8x64xf32>
    %96 = arith.addf %85, %95 : vector<8x64xf32>
    %97 = vector.extract_strided_slice %13 {offsets = [0, 9], sizes = [8, 55], strides = [1, 1]} : vector<8x64xf32> to vector<8x55xf32>
    %98 = vector.extract_strided_slice %13 {offsets = [0, 0], sizes = [8, 9], strides = [1, 1]} : vector<8x64xf32> to vector<8x9xf32>
    %99 = tpu.concatenate %97, %98 in 1 : vector<8x55xf32>, vector<8x9xf32> -> vector<8x64xf32>
    %c8 = arith.constant 8 : index
    %c0_56 = arith.constant 0 : index
    %c0_57 = arith.constant 0 : index
    %100 = vector.load %arg11[%c8, %c0_56, %c0_57] : memref<9x1x64xf32, #tpu.memory_space<vmem>>, vector<1x1x64xf32>
    %101 = vector.shape_cast %100 : vector<1x1x64xf32> to vector<1x64xf32>
    %102 = vector.broadcast %101 : vector<1x64xf32> to vector<8x64xf32>
    %103 = arith.mulf %99, %102 : vector<8x64xf32>
    %c8_58 = arith.constant 8 : index
    %c0_59 = arith.constant 0 : index
    %c0_60 = arith.constant 0 : index
    %104 = vector.load %arg5[%c8_58, %c0_59, %c0_60] : memref<9x8x8xf32, #tpu.memory_space<vmem>>, vector<1x8x8xf32>
    %105 = vector.shape_cast %104 : vector<1x8x8xf32> to vector<8x8xf32>
    %cst_61 = arith.constant dense<0.000000e+00> : vector<8x64xf32>
    %106 = tpu.matmul %105, %103, %cst_61 {dimension_numbers = #tpu.dot_dimension_numbers<[1], [0], [0], [1], [0, 0, 1, 1], [], []>} : vector<8x8xf32>, vector<8x64xf32>, vector<8x64xf32> -> vector<8x64xf32>
    %107 = arith.addf %96, %106 : vector<8x64xf32>
    %c0_62 = arith.constant 0 : index
    %c0_63 = arith.constant 0 : index
    %108 = vector.load %arg6[%c0_62, %c0_63] : memref<8x1xf32, #tpu.memory_space<vmem>>, vector<8x1xf32>
    %109 = vector.broadcast %108 : vector<8x1xf32> to vector<8x64xf32>
    %110 = arith.addf %107, %109 : vector<8x64xf32>
    %c0_64 = arith.constant 0 : index
    %c0_65 = arith.constant 0 : index
    %111 = vector.load %arg7[%c0_64, %c0_65] : memref<8x1xf32, #tpu.memory_space<vmem>>, vector<8x1xf32>
    %cst_66 = arith.constant 0.000000e+00 : f32
    %112 = vector.broadcast %cst_66 : f32 to vector<8x64xf32>
    %113 = arith.cmpf ogt, %110, %112 : vector<8x64xf32>
    %114 = vector.broadcast %111 : vector<8x1xf32> to vector<8x64xf32>
    %115 = arith.mulf %114, %110 : vector<8x64xf32>
    %116 = arith.select %113, %110, %115 : vector<8x64xi1>, vector<8x64xf32>
    %cst_67 = arith.constant 0.000000e+00 : f32
    %117 = vector.broadcast %cst_67 : f32 to vector<8x64xf32>
    %118 = vector.extract_strided_slice %116 {offsets = [0, 55], sizes = [8, 9], strides = [1, 1]} : vector<8x64xf32> to vector<8x9xf32>
    %119 = vector.extract_strided_slice %116 {offsets = [0, 0], sizes = [8, 55], strides = [1, 1]} : vector<8x64xf32> to vector<8x55xf32>
    %120 = tpu.concatenate %118, %119 in 1 : vector<8x9xf32>, vector<8x55xf32> -> vector<8x64xf32>
    %c0_68 = arith.constant 0 : index
    %c0_69 = arith.constant 0 : index
    %c0_70 = arith.constant 0 : index
    %121 = vector.load %arg11[%c0_68, %c0_69, %c0_70] : memref<9x1x64xf32, #tpu.memory_space<vmem>>, vector<1x1x64xf32>
    %122 = vector.shape_cast %121 : vector<1x1x64xf32> to vector<1x64xf32>
    %123 = vector.broadcast %122 : vector<1x64xf32> to vector<8x64xf32>
    %124 = arith.mulf %120, %123 : vector<8x64xf32>
    %c0_71 = arith.constant 0 : index
    %c0_72 = arith.constant 0 : index
    %c0_73 = arith.constant 0 : index
    %125 = vector.load %arg8[%c0_71, %c0_72, %c0_73] : memref<9x8x8xf32, #tpu.memory_space<vmem>>, vector<1x8x8xf32>
    %126 = vector.shape_cast %125 : vector<1x8x8xf32> to vector<8x8xf32>
    %cst_74 = arith.constant dense<0.000000e+00> : vector<8x64xf32>
    %127 = tpu.matmul %126, %124, %cst_74 {dimension_numbers = #tpu.dot_dimension_numbers<[1], [0], [0], [1], [0, 0, 1, 1], [], []>} : vector<8x8xf32>, vector<8x64xf32>, vector<8x64xf32> -> vector<8x64xf32>
    %128 = arith.addf %117, %127 : vector<8x64xf32>
    %129 = vector.extract_strided_slice %116 {offsets = [0, 56], sizes = [8, 8], strides = [1, 1]} : vector<8x64xf32> to vector<8x8xf32>
    %130 = vector.extract_strided_slice %116 {offsets = [0, 0], sizes = [8, 56], strides = [1, 1]} : vector<8x64xf32> to vector<8x56xf32>
    %131 = tpu.concatenate %129, %130 in 1 : vector<8x8xf32>, vector<8x56xf32> -> vector<8x64xf32>
    %c1_75 = arith.constant 1 : index
    %c0_76 = arith.constant 0 : index
    %c0_77 = arith.constant 0 : index
    %132 = vector.load %arg11[%c1_75, %c0_76, %c0_77] : memref<9x1x64xf32, #tpu.memory_space<vmem>>, vector<1x1x64xf32>
    %133 = vector.shape_cast %132 : vector<1x1x64xf32> to vector<1x64xf32>
    %134 = vector.broadcast %133 : vector<1x64xf32> to vector<8x64xf32>
    %135 = arith.mulf %131, %134 : vector<8x64xf32>
    %c1_78 = arith.constant 1 : index
    %c0_79 = arith.constant 0 : index
    %c0_80 = arith.constant 0 : index
    %136 = vector.load %arg8[%c1_78, %c0_79, %c0_80] : memref<9x8x8xf32, #tpu.memory_space<vmem>>, vector<1x8x8xf32>
    %137 = vector.shape_cast %136 : vector<1x8x8xf32> to vector<8x8xf32>
    %cst_81 = arith.constant dense<0.000000e+00> : vector<8x64xf32>
    %138 = tpu.matmul %137, %135, %cst_81 {dimension_numbers = #tpu.dot_dimension_numbers<[1], [0], [0], [1], [0, 0, 1, 1], [], []>} : vector<8x8xf32>, vector<8x64xf32>, vector<8x64xf32> -> vector<8x64xf32>
    %139 = arith.addf %128, %138 : vector<8x64xf32>
    %140 = vector.extract_strided_slice %116 {offsets = [0, 57], sizes = [8, 7], strides = [1, 1]} : vector<8x64xf32> to vector<8x7xf32>
    %141 = vector.extract_strided_slice %116 {offsets = [0, 0], sizes = [8, 57], strides = [1, 1]} : vector<8x64xf32> to vector<8x57xf32>
    %142 = tpu.concatenate %140, %141 in 1 : vector<8x7xf32>, vector<8x57xf32> -> vector<8x64xf32>
    %c2_82 = arith.constant 2 : index
    %c0_83 = arith.constant 0 : index
    %c0_84 = arith.constant 0 : index
    %143 = vector.load %arg11[%c2_82, %c0_83, %c0_84] : memref<9x1x64xf32, #tpu.memory_space<vmem>>, vector<1x1x64xf32>
    %144 = vector.shape_cast %143 : vector<1x1x64xf32> to vector<1x64xf32>
    %145 = vector.broadcast %144 : vector<1x64xf32> to vector<8x64xf32>
    %146 = arith.mulf %142, %145 : vector<8x64xf32>
    %c2_85 = arith.constant 2 : index
    %c0_86 = arith.constant 0 : index
    %c0_87 = arith.constant 0 : index
    %147 = vector.load %arg8[%c2_85, %c0_86, %c0_87] : memref<9x8x8xf32, #tpu.memory_space<vmem>>, vector<1x8x8xf32>
    %148 = vector.shape_cast %147 : vector<1x8x8xf32> to vector<8x8xf32>
    %cst_88 = arith.constant dense<0.000000e+00> : vector<8x64xf32>
    %149 = tpu.matmul %148, %146, %cst_88 {dimension_numbers = #tpu.dot_dimension_numbers<[1], [0], [0], [1], [0, 0, 1, 1], [], []>} : vector<8x8xf32>, vector<8x64xf32>, vector<8x64xf32> -> vector<8x64xf32>
    %150 = arith.addf %139, %149 : vector<8x64xf32>
    %151 = vector.extract_strided_slice %116 {offsets = [0, 63], sizes = [8, 1], strides = [1, 1]} : vector<8x64xf32> to vector<8x1xf32>
    %152 = vector.extract_strided_slice %116 {offsets = [0, 0], sizes = [8, 63], strides = [1, 1]} : vector<8x64xf32> to vector<8x63xf32>
    %153 = tpu.concatenate %151, %152 in 1 : vector<8x1xf32>, vector<8x63xf32> -> vector<8x64xf32>
    %c3_89 = arith.constant 3 : index
    %c0_90 = arith.constant 0 : index
    %c0_91 = arith.constant 0 : index
    %154 = vector.load %arg11[%c3_89, %c0_90, %c0_91] : memref<9x1x64xf32, #tpu.memory_space<vmem>>, vector<1x1x64xf32>
    %155 = vector.shape_cast %154 : vector<1x1x64xf32> to vector<1x64xf32>
    %156 = vector.broadcast %155 : vector<1x64xf32> to vector<8x64xf32>
    %157 = arith.mulf %153, %156 : vector<8x64xf32>
    %c3_92 = arith.constant 3 : index
    %c0_93 = arith.constant 0 : index
    %c0_94 = arith.constant 0 : index
    %158 = vector.load %arg8[%c3_92, %c0_93, %c0_94] : memref<9x8x8xf32, #tpu.memory_space<vmem>>, vector<1x8x8xf32>
    %159 = vector.shape_cast %158 : vector<1x8x8xf32> to vector<8x8xf32>
    %cst_95 = arith.constant dense<0.000000e+00> : vector<8x64xf32>
    %160 = tpu.matmul %159, %157, %cst_95 {dimension_numbers = #tpu.dot_dimension_numbers<[1], [0], [0], [1], [0, 0, 1, 1], [], []>} : vector<8x8xf32>, vector<8x64xf32>, vector<8x64xf32> -> vector<8x64xf32>
    %161 = arith.addf %150, %160 : vector<8x64xf32>
    %c4_96 = arith.constant 4 : index
    %c0_97 = arith.constant 0 : index
    %c0_98 = arith.constant 0 : index
    %162 = vector.load %arg8[%c4_96, %c0_97, %c0_98] : memref<9x8x8xf32, #tpu.memory_space<vmem>>, vector<1x8x8xf32>
    %163 = vector.shape_cast %162 : vector<1x8x8xf32> to vector<8x8xf32>
    %cst_99 = arith.constant dense<0.000000e+00> : vector<8x64xf32>
    %164 = tpu.matmul %163, %116, %cst_99 {dimension_numbers = #tpu.dot_dimension_numbers<[1], [0], [0], [1], [0, 0, 1, 1], [], []>} : vector<8x8xf32>, vector<8x64xf32>, vector<8x64xf32> -> vector<8x64xf32>
    %165 = arith.addf %161, %164 : vector<8x64xf32>
    %166 = vector.extract_strided_slice %116 {offsets = [0, 1], sizes = [8, 63], strides = [1, 1]} : vector<8x64xf32> to vector<8x63xf32>
    %167 = vector.extract_strided_slice %116 {offsets = [0, 0], sizes = [8, 1], strides = [1, 1]} : vector<8x64xf32> to vector<8x1xf32>
    %168 = tpu.concatenate %166, %167 in 1 : vector<8x63xf32>, vector<8x1xf32> -> vector<8x64xf32>
    %c5_100 = arith.constant 5 : index
    %c0_101 = arith.constant 0 : index
    %c0_102 = arith.constant 0 : index
    %169 = vector.load %arg11[%c5_100, %c0_101, %c0_102] : memref<9x1x64xf32, #tpu.memory_space<vmem>>, vector<1x1x64xf32>
    %170 = vector.shape_cast %169 : vector<1x1x64xf32> to vector<1x64xf32>
    %171 = vector.broadcast %170 : vector<1x64xf32> to vector<8x64xf32>
    %172 = arith.mulf %168, %171 : vector<8x64xf32>
    %c5_103 = arith.constant 5 : index
    %c0_104 = arith.constant 0 : index
    %c0_105 = arith.constant 0 : index
    %173 = vector.load %arg8[%c5_103, %c0_104, %c0_105] : memref<9x8x8xf32, #tpu.memory_space<vmem>>, vector<1x8x8xf32>
    %174 = vector.shape_cast %173 : vector<1x8x8xf32> to vector<8x8xf32>
    %cst_106 = arith.constant dense<0.000000e+00> : vector<8x64xf32>
    %175 = tpu.matmul %174, %172, %cst_106 {dimension_numbers = #tpu.dot_dimension_numbers<[1], [0], [0], [1], [0, 0, 1, 1], [], []>} : vector<8x8xf32>, vector<8x64xf32>, vector<8x64xf32> -> vector<8x64xf32>
    %176 = arith.addf %165, %175 : vector<8x64xf32>
    %177 = vector.extract_strided_slice %116 {offsets = [0, 7], sizes = [8, 57], strides = [1, 1]} : vector<8x64xf32> to vector<8x57xf32>
    %178 = vector.extract_strided_slice %116 {offsets = [0, 0], sizes = [8, 7], strides = [1, 1]} : vector<8x64xf32> to vector<8x7xf32>
    %179 = tpu.concatenate %177, %178 in 1 : vector<8x57xf32>, vector<8x7xf32> -> vector<8x64xf32>
    %c6_107 = arith.constant 6 : index
    %c0_108 = arith.constant 0 : index
    %c0_109 = arith.constant 0 : index
    %180 = vector.load %arg11[%c6_107, %c0_108, %c0_109] : memref<9x1x64xf32, #tpu.memory_space<vmem>>, vector<1x1x64xf32>
    %181 = vector.shape_cast %180 : vector<1x1x64xf32> to vector<1x64xf32>
    %182 = vector.broadcast %181 : vector<1x64xf32> to vector<8x64xf32>
    %183 = arith.mulf %179, %182 : vector<8x64xf32>
    %c6_110 = arith.constant 6 : index
    %c0_111 = arith.constant 0 : index
    %c0_112 = arith.constant 0 : index
    %184 = vector.load %arg8[%c6_110, %c0_111, %c0_112] : memref<9x8x8xf32, #tpu.memory_space<vmem>>, vector<1x8x8xf32>
    %185 = vector.shape_cast %184 : vector<1x8x8xf32> to vector<8x8xf32>
    %cst_113 = arith.constant dense<0.000000e+00> : vector<8x64xf32>
    %186 = tpu.matmul %185, %183, %cst_113 {dimension_numbers = #tpu.dot_dimension_numbers<[1], [0], [0], [1], [0, 0, 1, 1], [], []>} : vector<8x8xf32>, vector<8x64xf32>, vector<8x64xf32> -> vector<8x64xf32>
    %187 = arith.addf %176, %186 : vector<8x64xf32>
    %188 = vector.extract_strided_slice %116 {offsets = [0, 8], sizes = [8, 56], strides = [1, 1]} : vector<8x64xf32> to vector<8x56xf32>
    %189 = vector.extract_strided_slice %116 {offsets = [0, 0], sizes = [8, 8], strides = [1, 1]} : vector<8x64xf32> to vector<8x8xf32>
    %190 = tpu.concatenate %188, %189 in 1 : vector<8x56xf32>, vector<8x8xf32> -> vector<8x64xf32>
    %c7_114 = arith.constant 7 : index
    %c0_115 = arith.constant 0 : index
    %c0_116 = arith.constant 0 : index
    %191 = vector.load %arg11[%c7_114, %c0_115, %c0_116] : memref<9x1x64xf32, #tpu.memory_space<vmem>>, vector<1x1x64xf32>
    %192 = vector.shape_cast %191 : vector<1x1x64xf32> to vector<1x64xf32>
    %193 = vector.broadcast %192 : vector<1x64xf32> to vector<8x64xf32>
    %194 = arith.mulf %190, %193 : vector<8x64xf32>
    %c7_117 = arith.constant 7 : index
    %c0_118 = arith.constant 0 : index
    %c0_119 = arith.constant 0 : index
    %195 = vector.load %arg8[%c7_117, %c0_118, %c0_119] : memref<9x8x8xf32, #tpu.memory_space<vmem>>, vector<1x8x8xf32>
    %196 = vector.shape_cast %195 : vector<1x8x8xf32> to vector<8x8xf32>
    %cst_120 = arith.constant dense<0.000000e+00> : vector<8x64xf32>
    %197 = tpu.matmul %196, %194, %cst_120 {dimension_numbers = #tpu.dot_dimension_numbers<[1], [0], [0], [1], [0, 0, 1, 1], [], []>} : vector<8x8xf32>, vector<8x64xf32>, vector<8x64xf32> -> vector<8x64xf32>
    %198 = arith.addf %187, %197 : vector<8x64xf32>
    %199 = vector.extract_strided_slice %116 {offsets = [0, 9], sizes = [8, 55], strides = [1, 1]} : vector<8x64xf32> to vector<8x55xf32>
    %200 = vector.extract_strided_slice %116 {offsets = [0, 0], sizes = [8, 9], strides = [1, 1]} : vector<8x64xf32> to vector<8x9xf32>
    %201 = tpu.concatenate %199, %200 in 1 : vector<8x55xf32>, vector<8x9xf32> -> vector<8x64xf32>
    %c8_121 = arith.constant 8 : index
    %c0_122 = arith.constant 0 : index
    %c0_123 = arith.constant 0 : index
    %202 = vector.load %arg11[%c8_121, %c0_122, %c0_123] : memref<9x1x64xf32, #tpu.memory_space<vmem>>, vector<1x1x64xf32>
    %203 = vector.shape_cast %202 : vector<1x1x64xf32> to vector<1x64xf32>
    %204 = vector.broadcast %203 : vector<1x64xf32> to vector<8x64xf32>
    %205 = arith.mulf %201, %204 : vector<8x64xf32>
    %c8_124 = arith.constant 8 : index
    %c0_125 = arith.constant 0 : index
    %c0_126 = arith.constant 0 : index
    %206 = vector.load %arg8[%c8_124, %c0_125, %c0_126] : memref<9x8x8xf32, #tpu.memory_space<vmem>>, vector<1x8x8xf32>
    %207 = vector.shape_cast %206 : vector<1x8x8xf32> to vector<8x8xf32>
    %cst_127 = arith.constant dense<0.000000e+00> : vector<8x64xf32>
    %208 = tpu.matmul %207, %205, %cst_127 {dimension_numbers = #tpu.dot_dimension_numbers<[1], [0], [0], [1], [0, 0, 1, 1], [], []>} : vector<8x8xf32>, vector<8x64xf32>, vector<8x64xf32> -> vector<8x64xf32>
    %209 = arith.addf %198, %208 : vector<8x64xf32>
    %c0_128 = arith.constant 0 : index
    %c0_129 = arith.constant 0 : index
    %210 = vector.load %arg9[%c0_128, %c0_129] : memref<8x1xf32, #tpu.memory_space<vmem>>, vector<8x1xf32>
    %211 = vector.broadcast %210 : vector<8x1xf32> to vector<8x64xf32>
    %212 = arith.addf %209, %211 : vector<8x64xf32>
    %c0_130 = arith.constant 0 : index
    %c0_131 = arith.constant 0 : index
    %213 = vector.load %arg10[%c0_130, %c0_131] : memref<8x1xf32, #tpu.memory_space<vmem>>, vector<8x1xf32>
    %cst_132 = arith.constant 0.000000e+00 : f32
    %214 = vector.broadcast %cst_132 : f32 to vector<8x64xf32>
    %215 = arith.cmpf ogt, %212, %214 : vector<8x64xf32>
    %216 = vector.broadcast %213 : vector<8x1xf32> to vector<8x64xf32>
    %217 = arith.mulf %216, %212 : vector<8x64xf32>
    %218 = arith.select %215, %212, %217 : vector<8x64xi1>, vector<8x64xf32>
    %219 = arith.addf %218, %14 : vector<8x64xf32>
    %c0_133 = arith.constant 0 : index
    %c0_134 = arith.constant 0 : index
    %c0_135 = arith.constant 0 : index
    %220 = vector.load %arg12[%c0_133, %c0_134, %c0_135] : memref<1x8x64xf32, #tpu.memory_space<vmem>>, vector<1x8x64xf32>
    %221 = vector.shape_cast %220 : vector<1x8x64xf32> to vector<8x64xf32>
    %222 = vector.shape_cast %219 : vector<8x64xf32> to vector<1x8x64xf32>
    tpu.vector_store %arg12[%c0_133, %c0_134, %c0_135], %222 {strides = array<i32>} : memref<1x8x64xf32, #tpu.memory_space<vmem>>, vector<1x8x64xf32>,
    return
  }
  func.func @transform_0(%arg0: i32) -> (i32, i32, i32) {
    %c0_i32 = arith.constant 0 : i32
    %c0_i32_0 = arith.constant 0 : i32
    %c0_i32_1 = arith.constant 0 : i32
    return %arg0, %c0_i32, %c0_i32_0 : i32, i32, i32
  }
  func.func @transform_1(%arg0: i32) -> (i32, i32) {
    %c0_i32 = arith.constant 0 : i32
    %c0_i32_0 = arith.constant 0 : i32
    %c0_i32_1 = arith.constant 0 : i32
    return %c0_i32, %c0_i32_0 : i32, i32
  }
  func.func @transform_2(%arg0: i32) -> (i32, i32) {
    %c0_i32 = arith.constant 0 : i32
    %c0_i32_0 = arith.constant 0 : i32
    %c0_i32_1 = arith.constant 0 : i32
    return %c0_i32, %c0_i32_0 : i32, i32
  }
  func.func @transform_3(%arg0: i32) -> (i32, i32) {
    %c0_i32 = arith.constant 0 : i32
    %c0_i32_0 = arith.constant 0 : i32
    %c0_i32_1 = arith.constant 0 : i32
    return %c0_i32, %c0_i32_0 : i32, i32
  }
  func.func @transform_4(%arg0: i32) -> (i32, i32, i32) {
    %c0_i32 = arith.constant 0 : i32
    %c0_i32_0 = arith.constant 0 : i32
    %c0_i32_1 = arith.constant 0 : i32
    %c0_i32_2 = arith.constant 0 : i32
    return %c0_i32, %c0_i32_0, %c0_i32_1 : i32, i32, i32
  }
  func.func @transform_5(%arg0: i32) -> (i32, i32) {
    %c0_i32 = arith.constant 0 : i32
    %c0_i32_0 = arith.constant 0 : i32
    %c0_i32_1 = arith.constant 0 : i32
    return %c0_i32, %c0_i32_0 : i32, i32
  }
  func.func @transform_6(%arg0: i32) -> (i32, i32) {
    %c0_i32 = arith.constant 0 : i32
    %c0_i32_0 = arith.constant 0 : i32
    %c0_i32_1 = arith.constant 0 : i32
    return %c0_i32, %c0_i32_0 : i32, i32
  }
  func.func @transform_7(%arg0: i32) -> (i32, i32, i32) {
    %c0_i32 = arith.constant 0 : i32
    %c0_i32_0 = arith.constant 0 : i32
    %c0_i32_1 = arith.constant 0 : i32
    %c0_i32_2 = arith.constant 0 : i32
    return %c0_i32, %c0_i32_0, %c0_i32_1 : i32, i32, i32
  }
  func.func @transform_8(%arg0: i32) -> (i32, i32) {
    %c0_i32 = arith.constant 0 : i32
    %c0_i32_0 = arith.constant 0 : i32
    %c0_i32_1 = arith.constant 0 : i32
    return %c0_i32, %c0_i32_0 : i32, i32
  }
  func.func @transform_9(%arg0: i32) -> (i32, i32) {
    %c0_i32 = arith.constant 0 : i32
    %c0_i32_0 = arith.constant 0 : i32
    %c0_i32_1 = arith.constant 0 : i32
    return %c0_i32, %c0_i32_0 : i32, i32
  }
  func.func @transform_10(%arg0: i32) -> (i32, i32, i32) {
    %c0_i32 = arith.constant 0 : i32
    %c0_i32_0 = arith.constant 0 : i32
    %c0_i32_1 = arith.constant 0 : i32
    %c0_i32_2 = arith.constant 0 : i32
    return %c0_i32, %c0_i32_0, %c0_i32_1 : i32, i32, i32
  }
  func.func @transform_11(%arg0: i32) -> (i32, i32, i32) {
    %c0_i32 = arith.constant 0 : i32
    %c0_i32_0 = arith.constant 0 : i32
    %c0_i32_1 = arith.constant 0 : i32
    return %arg0, %c0_i32, %c0_i32_0 : i32, i32, i32
  }
}

</mosaic_0001>

<llo_original>
// kernel: tpu_custom_call.1
$region0: #{tpu_custom_call.1}
  #allocation0 [shape = 'u32[]', space=smem, size = 0x4, offset = 0x4, fixed_abs, tag = 'smem constant byte address 0x4 - core index']
  #allocation1 [shape = 'u32[144,128]{1,0:T(1,128)}', space=vmem, size = 0x12000, scoped, tag = 'internal scratch']
  %s0 = inlined_call_operand.vmem [shape: f32[2,4,64], index: 0, kind: input, shape index: {}]
  %s1 = inlined_call_operand.vmem [shape: f32[16,4], index: 1, kind: input, shape index: {}]
  %s2 = inlined_call_operand.vmem [shape: f32[16,1], index: 2, kind: input, shape index: {}]
  %s3 = inlined_call_operand.vmem [shape: f32[16,1], index: 3, kind: input, shape index: {}]
  %s4 = inlined_call_operand.vmem [shape: f32[9,8,8], index: 4, kind: input, shape index: {}]
  %s5 = inlined_call_operand.vmem [shape: f32[8,1], index: 5, kind: input, shape index: {}]
  %s6 = inlined_call_operand.vmem [shape: f32[8,1], index: 6, kind: input, shape index: {}]
  %s7 = inlined_call_operand.vmem [shape: f32[9,8,8], index: 7, kind: input, shape index: {}]
  %s8 = inlined_call_operand.vmem [shape: f32[8,1], index: 8, kind: input, shape index: {}]
  %s9 = inlined_call_operand.vmem [shape: f32[8,1], index: 9, kind: input, shape index: {}]
  %s10 = inlined_call_operand.vmem [shape: f32[9,1,64], index: 10, kind: input, shape index: {}]
  %s11 = inlined_call_operand.hbm [shape: f32[2,8,64], index: 11, kind: output, shape index: {}]
  %s12 = sld [smem:[#allocation0]]
  $region77: #{tpu_custom_call.1} parent=0
    _
  %s14 = ssub.s32 1, %s12
  %s15 = scalar_select 0, %s14, %s12
  $region1: #{tpu_custom_call.1} parent=0
    #allocation2 [shape = 'u8[8192]{0}', space=vmem, size = 0x2000, scoped, tag = 'output window, operand 0']
    #allocation3 [shape = 's32[2]{0}', space=sflag, size = 0x8, scoped, tag = 'scoped memory for tpu_custom_call.1']
    %16 = vsyncpa [#allocation3], 0
    %s17 = scalar_lea.sflag [#allocation3], 1
    %18 = vsyncpa %s17, 0
    loop: start=0, step=1, limit=4
    $region2: #{tpu_custom_call.1} parent=1 // loop_pre_header
      _
    $region3: #{tpu_custom_call.1} parent=1 // loop_header
      %s20 = sphi 0, %s24
      %p21 = scmp.ge.s32.totalorder %s20, 4
      %s30 = sphi 0, %s32
      %s33 = sphi 0, %s30
      %s34 = sphi 0, %s33
      %s50 = sphi 0, %s34
      %s54 = sphi 0, %s54
      %s56 = sphi 0, %s54
      %s57 = sphi 0, %s56
      %s71 = sphi 0, %s57
      %s75 = sphi 0, %s75
      %s77 = sphi 0, %s75
      %s78 = sphi 0, %s77
      %s92 = sphi 0, %s78
      %s96 = sphi 0, %s96
      %s98 = sphi 0, %s96
      %s99 = sphi 0, %s98
      %s113 = sphi 0, %s99
      %s117 = sphi 0, %s117
      %s119 = sphi 0, %s117
      %s120 = sphi 0, %s119
      %s134 = sphi 0, %s120
      %s138 = sphi 0, %s138
      %s140 = sphi 0, %s138
      %s141 = sphi 0, %s140
      %s155 = sphi 0, %s141
      %s159 = sphi 0, %s159
      %s161 = sphi 0, %s159
      %s162 = sphi 0, %s161
      %s176 = sphi 0, %s162
      %s180 = sphi 0, %s180
      %s182 = sphi 0, %s180
      %s183 = sphi 0, %s182
      %s197 = sphi 0, %s183
      %s201 = sphi 0, %s201
      %s203 = sphi 0, %s201
      %s204 = sphi 0, %s203
      %s218 = sphi 0, %s204
      %s222 = sphi 0, %s222
      %s224 = sphi 0, %s222
      %s225 = sphi 0, %s224
      %s239 = sphi 0, %s225
      %s243 = sphi 0, %s243
      %s245 = sphi 0, %s243
      %s246 = sphi 0, %s245
      %s260 = sphi 0, %s246
      %s266 = sphi 0, %s268
      %s269 = sphi 0, %s266
      %s270 = sphi 0, %s269
      %s286 = sphi 0, %s270
    $region4: #{tpu_custom_call.1} parent=1 // loop_header_branch
      %23 = sbr.rel (%p21) target = $region8
    $region5: #{tpu_custom_call.1} parent=1 // loop_body
      %s25 = ssub.s32 %s20, 1
      %s26 = ssub.s32 %s20, 2
      %s27 = sadd.s32 %s20, 1
      %s28 = ssub.s32 %s20, %s27
      %p29 = scmp.eq.s32.totalorder %s28, 0
      %s31 = sadd.s32 %s30, 1
      %s32 = scalar_select %p29, %s30, %s31
      %p35 = pneg %p29
      %p36 = scmp.eq.s32.totalorder %s20, 1
      %p37 = por %p35, %p36
      %p38 = scmp.ne.s32.totalorder %s30, %s33
      %p39 = scmp.eq.s32.totalorder %s20, 0
      %p40 = por %p38, %p39
      %p41 = scmp.ne.s32.totalorder %s30, %s33
      %p42 = scmp.eq.s32.totalorder %s25, 1
      %p43 = por %p41, %p42
      %p44 = scmp.ne.s32.totalorder %s33, %s34
      %p45 = scmp.eq.s32.totalorder %s25, 0
      %p46 = por %p44, %p45
      %p47 = scmp.ne.s32.totalorder %s33, %s34
      %p48 = scmp.eq.s32.totalorder %s26, 1
      %p49 = por %p47, %p48
      %p51 = scmp.ne.s32.totalorder %s34, %s50
      %p52 = scmp.eq.s32.totalorder %s26, 0
      %p53 = por %p51, %p52
      %s55 = sadd.s32 %s54, 1
      %p58 = scmp.eq.s32.totalorder %s20, 1
      %p59 = scmp.ne.s32.totalorder %s54, %s56
      %p60 = scmp.eq.s32.totalorder %s20, 0
      %p61 = por %p59, %p60
      %p62 = scmp.ne.s32.totalorder %s54, %s56
      %p63 = scmp.eq.s32.totalorder %s25, 1
      %p64 = por %p62, %p63
      %p65 = scmp.ne.s32.totalorder %s56, %s57
      %p66 = scmp.eq.s32.totalorder %s25, 0
      %p67 = por %p65, %p66
      %p68 = scmp.ne.s32.totalorder %s56, %s57
      %p69 = scmp.eq.s32.totalorder %s26, 1
      %p70 = por %p68, %p69
      %p72 = scmp.ne.s32.totalorder %s57, %s71
      %p73 = scmp.eq.s32.totalorder %s26, 0
      %p74 = por %p72, %p73
      %s76 = sadd.s32 %s75, 1
      %p79 = scmp.eq.s32.totalorder %s20, 1
      %p80 = scmp.ne.s32.totalorder %s75, %s77
      %p81 = scmp.eq.s32.totalorder %s20, 0
      %p82 = por %p80, %p81
      %p83 = scmp.ne.s32.totalorder %s75, %s77
      %p84 = scmp.eq.s32.totalorder %s25, 1
      %p85 = por %p83, %p84
      %p86 = scmp.ne.s32.totalorder %s77, %s78
      %p87 = scmp.eq.s32.totalorder %s25, 0
      %p88 = por %p86, %p87
      %p89 = scmp.ne.s32.totalorder %s77, %s78
      %p90 = scmp.eq.s32.totalorder %s26, 1
      %p91 = por %p89, %p90
      %p93 = scmp.ne.s32.totalorder %s78, %s92
      %p94 = scmp.eq.s32.totalorder %s26, 0
      %p95 = por %p93, %p94
      %s97 = sadd.s32 %s96, 1
      %p100 = scmp.eq.s32.totalorder %s20, 1
      %p101 = scmp.ne.s32.totalorder %s96, %s98
      %p102 = scmp.eq.s32.totalorder %s20, 0
      %p103 = por %p101, %p102
      %p104 = scmp.ne.s32.totalorder %s96, %s98
      %p105 = scmp.eq.s32.totalorder %s25, 1
      %p106 = por %p104, %p105
      %p107 = scmp.ne.s32.totalorder %s98, %s99
      %p108 = scmp.eq.s32.totalorder %s25, 0
      %p109 = por %p107, %p108
      %p110 = scmp.ne.s32.totalorder %s98, %s99
      %p111 = scmp.eq.s32.totalorder %s26, 1
      %p112 = por %p110, %p111
      %p114 = scmp.ne.s32.totalorder %s99, %s113
      %p115 = scmp.eq.s32.totalorder %s26, 0
      %p116 = por %p114, %p115
      %s118 = sadd.s32 %s117, 1
      %p121 = scmp.eq.s32.totalorder %s20, 1
      %p122 = scmp.ne.s32.totalorder %s117, %s119
      %p123 = scmp.eq.s32.totalorder %s20, 0
      %p124 = por %p122, %p123
      %p125 = scmp.ne.s32.totalorder %s117, %s119
      %p126 = scmp.eq.s32.totalorder %s25, 1
      %p127 = por %p125, %p126
      %p128 = scmp.ne.s32.totalorder %s119, %s120
      %p129 = scmp.eq.s32.totalorder %s25, 0
      %p130 = por %p128, %p129
      %p131 = scmp.ne.s32.totalorder %s119, %s120
      %p132 = scmp.eq.s32.totalorder %s26, 1
      %p133 = por %p131, %p132
      %p135 = scmp.ne.s32.totalorder %s120, %s134
      %p136 = scmp.eq.s32.totalorder %s26, 0
      %p137 = por %p135, %p136
      %s139 = sadd.s32 %s138, 1
      %p142 = scmp.eq.s32.totalorder %s20, 1
      %p143 = scmp.ne.s32.totalorder %s138, %s140
      %p144 = scmp.eq.s32.totalorder %s20, 0
      %p145 = por %p143, %p144
      %p146 = scmp.ne.s32.totalorder %s138, %s140
      %p147 = scmp.eq.s32.totalorder %s25, 1
      %p148 = por %p146, %p147
      %p149 = scmp.ne.s32.totalorder %s140, %s141
      %p150 = scmp.eq.s32.totalorder %s25, 0
      %p151 = por %p149, %p150
      %p152 = scmp.ne.s32.totalorder %s140, %s141
      %p153 = scmp.eq.s32.totalorder %s26, 1
      %p154 = por %p152, %p153
      %p156 = scmp.ne.s32.totalorder %s141, %s155
      %p157 = scmp.eq.s32.totalorder %s26, 0
      %p158 = por %p156, %p157
      %s160 = sadd.s32 %s159, 1
      %p163 = scmp.eq.s32.totalorder %s20, 1
      %p164 = scmp.ne.s32.totalorder %s159, %s161
      %p165 = scmp.eq.s32.totalorder %s20, 0
      %p166 = por %p164, %p165
      %p167 = scmp.ne.s32.totalorder %s159, %s161
      %p168 = scmp.eq.s32.totalorder %s25, 1
      %p169 = por %p167, %p168
      %p170 = scmp.ne.s32.totalorder %s161, %s162
      %p171 = scmp.eq.s32.totalorder %s25, 0
      %p172 = por %p170, %p171
      %p173 = scmp.ne.s32.totalorder %s161, %s162
      %p174 = scmp.eq.s32.totalorder %s26, 1
      %p175 = por %p173, %p174
      %p177 = scmp.ne.s32.totalorder %s162, %s176
      %p178 = scmp.eq.s32.totalorder %s26, 0
      %p179 = por %p177, %p178
      %s181 = sadd.s32 %s180, 1
      %p184 = scmp.eq.s32.totalorder %s20, 1
      %p185 = scmp.ne.s32.totalorder %s180, %s182
      %p186 = scmp.eq.s32.totalorder %s20, 0
      %p187 = por %p185, %p186
      %p188 = scmp.ne.s32.totalorder %s180, %s182
      %p189 = scmp.eq.s32.totalorder %s25, 1
      %p190 = por %p188, %p189
      %p191 = scmp.ne.s32.totalorder %s182, %s183
      %p192 = scmp.eq.s32.totalorder %s25, 0
      %p193 = por %p191, %p192
      %p194 = scmp.ne.s32.totalorder %s182, %s183
      %p195 = scmp.eq.s32.totalorder %s26, 1
      %p196 = por %p194, %p195
      %p198 = scmp.ne.s32.totalorder %s183, %s197
      %p199 = scmp.eq.s32.totalorder %s26, 0
      %p200 = por %p198, %p199
      %s202 = sadd.s32 %s201, 1
      %p205 = scmp.eq.s32.totalorder %s20, 1
      %p206 = scmp.ne.s32.totalorder %s201, %s203
      %p207 = scmp.eq.s32.totalorder %s20, 0
      %p208 = por %p206, %p207
      %p209 = scmp.ne.s32.totalorder %s201, %s203
      %p210 = scmp.eq.s32.totalorder %s25, 1
      %p211 = por %p209, %p210
      %p212 = scmp.ne.s32.totalorder %s203, %s204
      %p213 = scmp.eq.s32.totalorder %s25, 0
      %p214 = por %p212, %p213
      %p215 = scmp.ne.s32.totalorder %s203, %s204
      %p216 = scmp.eq.s32.totalorder %s26, 1
      %p217 = por %p215, %p216
      %p219 = scmp.ne.s32.totalorder %s204, %s218
      %p220 = scmp.eq.s32.totalorder %s26, 0
      %p221 = por %p219, %p220
      %s223 = sadd.s32 %s222, 1
      %p226 = scmp.eq.s32.totalorder %s20, 1
      %p227 = scmp.ne.s32.totalorder %s222, %s224
      %p228 = scmp.eq.s32.totalorder %s20, 0
      %p229 = por %p227, %p228
      %p230 = scmp.ne.s32.totalorder %s222, %s224
      %p231 = scmp.eq.s32.totalorder %s25, 1
      %p232 = por %p230, %p231
      %p233 = scmp.ne.s32.totalorder %s224, %s225
      %p234 = scmp.eq.s32.totalorder %s25, 0
      %p235 = por %p233, %p234
      %p236 = scmp.ne.s32.totalorder %s224, %s225
      %p237 = scmp.eq.s32.totalorder %s26, 1
      %p238 = por %p236, %p237
      %p240 = scmp.ne.s32.totalorder %s225, %s239
      %p241 = scmp.eq.s32.totalorder %s26, 0
      %p242 = por %p240, %p241
      %s244 = sadd.s32 %s243, 1
      %p247 = scmp.eq.s32.totalorder %s20, 1
      %p248 = scmp.ne.s32.totalorder %s243, %s245
      %p249 = scmp.eq.s32.totalorder %s20, 0
      %p250 = por %p248, %p249
      %p251 = scmp.ne.s32.totalorder %s243, %s245
      %p252 = scmp.eq.s32.totalorder %s25, 1
      %p253 = por %p251, %p252
      %p254 = scmp.ne.s32.totalorder %s245, %s246
      %p255 = scmp.eq.s32.totalorder %s25, 0
      %p256 = por %p254, %p255
      %p257 = scmp.ne.s32.totalorder %s245, %s246
      %p258 = scmp.eq.s32.totalorder %s26, 1
      %p259 = por %p257, %p258
      %p261 = scmp.ne.s32.totalorder %s246, %s260
      %p262 = scmp.eq.s32.totalorder %s26, 0
      %p263 = por %p261, %p262
      %s264 = ssub.s32 %s20, %s27
      %p265 = scmp.eq.s32.totalorder %s264, 0
      %s267 = sadd.s32 %s266, 1
      %s268 = scalar_select %p265, %s266, %s267
      %p271 = pneg %p265
      %p272 = scmp.eq.s32.totalorder %s20, 1
      %p273 = por %p271, %p272
      %p274 = scmp.ne.s32.totalorder %s266, %s269
      %p275 = scmp.eq.s32.totalorder %s20, 0
      %p276 = por %p274, %p275
      %p277 = scmp.ne.s32.totalorder %s266, %s269
      %p278 = scmp.eq.s32.totalorder %s25, 1
      %p279 = por %p277, %p278
      %p280 = scmp.ne.s32.totalorder %s269, %s270
      %p281 = scmp.eq.s32.totalorder %s25, 0
      %p282 = por %p280, %p281
      %p283 = scmp.ne.s32.totalorder %s269, %s270
      %p284 = scmp.eq.s32.totalorder %s26, 1
      %p285 = por %p283, %p284
      %p287 = scmp.ne.s32.totalorder %s270, %s286
      %p288 = scmp.eq.s32.totalorder %s26, 0
      %p289 = por %p287, %p288
      %p290 = scmp.le.s32.totalorder 1, %s20
      %p291 = scmp.lt.s32.totalorder %s20, 3
      %p292 = pnand %p290, %p291
      %p293 = pneg %p292
      // Predicated region
      $region9: #{tpu_custom_call.1} parent=5 // pred_check
        _
      $region10: #{tpu_custom_call.1} parent=5 // pred_check_branch
        %295 = sbr.rel (%p292) target = $region12
      $region11: #{tpu_custom_call.1} parent=5 // pred_region
        %s296 = ssub.s32 %s20, 1
        // Predicated region
        $region13: #{tpu_custom_call.1} parent=11 // pred_check
          %p297 = pneg %p67
        $region14: #{tpu_custom_call.1} parent=11 // pred_check_branch
          %299 = sbr.rel (%p297) target = $region16
        $region15: #{tpu_custom_call.1} parent=11 // pred_region
          _
        $region16: #{tpu_custom_call.1} parent=11 // pred_fallthru
          _
        // Predicated region
        $region17: #{tpu_custom_call.1} parent=11 // pred_check
          %p300 = pneg %p88
        $region18: #{tpu_custom_call.1} parent=11 // pred_check_branch
          %302 = sbr.rel (%p300) target = $region20
        $region19: #{tpu_custom_call.1} parent=11 // pred_region
          _
        $region20: #{tpu_custom_call.1} parent=11 // pred_fallthru
          _
        // Predicated region
        $region21: #{tpu_custom_call.1} parent=11 // pred_check
          %p303 = pneg %p109
        $region22: #{tpu_custom_call.1} parent=11 // pred_check_branch
          %305 = sbr.rel (%p303) target = $region24
        $region23: #{tpu_custom_call.1} parent=11 // pred_region
          _
        $region24: #{tpu_custom_call.1} parent=11 // pred_fallthru
          _
        // Predicated region
        $region25: #{tpu_custom_call.1} parent=11 // pred_check
          %p306 = pneg %p130
        $region26: #{tpu_custom_call.1} parent=11 // pred_check_branch
          %308 = sbr.rel (%p306) target = $region28
        $region27: #{tpu_custom_call.1} parent=11 // pred_region
          _
        $region28: #{tpu_custom_call.1} parent=11 // pred_fallthru
          _
        // Predicated region
        $region29: #{tpu_custom_call.1} parent=11 // pred_check
          %p309 = pneg %p151
        $region30: #{tpu_custom_call.1} parent=11 // pred_check_branch
          %311 = sbr.rel (%p309) target = $region32
        $region31: #{tpu_custom_call.1} parent=11 // pred_region
          _
        $region32: #{tpu_custom_call.1} parent=11 // pred_fallthru
          _
        // Predicated region
        $region33: #{tpu_custom_call.1} parent=11 // pred_check
          %p312 = pneg %p172
        $region34: #{tpu_custom_call.1} parent=11 // pred_check_branch
          %314 = sbr.rel (%p312) target = $region36
        $region35: #{tpu_custom_call.1} parent=11 // pred_region
          _
        $region36: #{tpu_custom_call.1} parent=11 // pred_fallthru
          _
        // Predicated region
        $region37: #{tpu_custom_call.1} parent=11 // pred_check
          %p315 = pneg %p193
        $region38: #{tpu_custom_call.1} parent=11 // pred_check_branch
          %317 = sbr.rel (%p315) target = $region40
        $region39: #{tpu_custom_call.1} parent=11 // pred_region
          _
        $region40: #{tpu_custom_call.1} parent=11 // pred_fallthru
          _
        // Predicated region
        $region41: #{tpu_custom_call.1} parent=11 // pred_check
          %p318 = pneg %p214
        $region42: #{tpu_custom_call.1} parent=11 // pred_check_branch
          %320 = sbr.rel (%p318) target = $region44
        $region43: #{tpu_custom_call.1} parent=11 // pred_region
          _
        $region44: #{tpu_custom_call.1} parent=11 // pred_fallthru
          _
        // Predicated region
        $region45: #{tpu_custom_call.1} parent=11 // pred_check
          %p321 = pneg %p235
        $region46: #{tpu_custom_call.1} parent=11 // pred_check_branch
          %323 = sbr.rel (%p321) target = $region48
        $region47: #{tpu_custom_call.1} parent=11 // pred_region
          _
        $region48: #{tpu_custom_call.1} parent=11 // pred_fallthru
          _
        // Predicated region
        $region49: #{tpu_custom_call.1} parent=11 // pred_check
          %p324 = pneg %p256
        $region50: #{tpu_custom_call.1} parent=11 // pred_check_branch
          %326 = sbr.rel (%p324) target = $region52
        $region51: #{tpu_custom_call.1} parent=11 // pred_region
          _
        $region52: #{tpu_custom_call.1} parent=11 // pred_fallthru
          _
      $region12: #{tpu_custom_call.1} parent=5 // pred_fallthru
        _
      %p327 = scmp.lt.s32.totalorder %s20, 2
      // Predicated region
      $region53: #{tpu_custom_call.1} parent=5 // pred_check
        %p328 = pneg %p327
      $region54: #{tpu_custom_call.1} parent=5 // pred_check_branch
        %330 = sbr.rel (%p328) target = $region56
      $region55: #{tpu_custom_call.1} parent=5 // pred_region
        // Predicated region
        $region57: #{tpu_custom_call.1} parent=55 // pred_check
          %p331 = pneg %p40
        $region58: #{tpu_custom_call.1} parent=55 // pred_check_branch
          %333 = sbr.rel (%p331) target = $region60
        $region59: #{tpu_custom_call.1} parent=55 // pred_region
          %p334 = scmp.lt.s32.totalorder %s20, 1
          %s335 = scalar_select %p334, %s20, 1
          %s336 = smul.addr %s335, 4
          %s337 = scalar_lea.vmem %s0, %s336
        $region60: #{tpu_custom_call.1} parent=55 // pred_fallthru
          _
      $region56: #{tpu_custom_call.1} parent=5 // pred_fallthru
        _
      %p338 = scmp.le.s32.totalorder 1, %s20
      %p339 = scmp.lt.s32.totalorder %s20, 3
      %p340 = pnand %p338, %p339
      %p341 = pneg %p340
      // Predicated region
      $region61: #{tpu_custom_call.1} parent=5 // pred_check
        _
      $region62: #{tpu_custom_call.1} parent=5 // pred_check_branch
        %343 = sbr.rel (%p340) target = $region64
      $region63: #{tpu_custom_call.1} parent=5 // pred_region
        %s344 = ssub.s32 %s20, 1
        %p345 = scmp.lt.s32.totalorder %s25, 1
        %s346 = scalar_select %p345, %s25, 1
        %s347 = smul.addr %s346, 4
        %s348 = scalar_lea.vmem %s0, %s347
        %p349 = pneg %p46
        %p350 = pneg %p43
        %p351 = pneg %p67
        %p352 = pneg %p64
        %p353 = pneg %p88
        %p354 = pneg %p85
        %p355 = pneg %p109
        %p356 = pneg %p106
        %p357 = pneg %p130
        %p358 = pneg %p127
        %p359 = pneg %p151
        %p360 = pneg %p148
        %p361 = pneg %p172
        %p362 = pneg %p169
        %p363 = pneg %p193
        %p364 = pneg %p190
        %p365 = pneg %p214
        %p366 = pneg %p211
        %p367 = pneg %p235
        %p368 = pneg %p232
        %p369 = pneg %p256
        %p370 = pneg %p253
        %p371 = pneg %p282
        %p372 = pneg %p279
        %s373 = sand.u32 %s269, 1
        %s374 = scalar_lea.sflag [#allocation3], %s373
        %s375 = sand.u32 %s269, 1
        %s376 = smul.addr %s375, 8
        %s377 = scalar_lea.vmem [#allocation2], %s376
        %p378 = scmp.lt.s32.totalorder %s25, 1
        %s379 = scalar_select %p378, %s25, 1
        %s380 = smul.addr %s379, 4
        %s381 = scalar_lea.vmem %s0, %s380
        %v382 = vld [vmem:[%s1] sm:$0xff]
        %v383 = vld [vmem:[%s1 + $0x8] sm:$0xff]
        %v384 = vld [vmem:[%s381] sm:$0xf]
        %v385 = vld [vmem:[%s2] sm:$0xff]
        %v386 = vld [vmem:[%s2 + $0x8] sm:$0xff]
        %388 = vset.pattern.permute.xlu0 0
        %389 = vperm.xlu0 %388, %v385
        %v390 = vpop.permute.xlu0 %389
        %393 = vset.pattern.permute.xlu0 0
        %394 = vperm.xlu0 %393, %v386
        %v395 = vpop.permute.xlu0 %394
        %vm397 = vcmask 31744
        %v399 = vsel %vm397, %v382, 0
        %v402 = vsel %vm397, %v383, 0
        %vm404 = vcmask 1043456
        %v406 = vsel %vm404, %v384, 0
        %408 = vmatprep.subr.mxu0 0.0
        %409 = vmatpush1.msra.mxu0 %v406
        %410 = vmatprep.subr.mxu0 0.0
        %411 = vmatpush1.msra.mxu0 0.0
        %412 = vmatprep.subr.mxu0 0.0
        %413 = vmatpush1.msra.mxu0 0.0
        %414 = vmatprep.subr.mxu0 0.0
        %415 = vmatpush1.msra.mxu0 0.0
        %416 = vmatprep.subr.mxu0 0.0
        %417 = vmatpush1.msra.mxu0 0.0
        %418 = vmatprep.subr.mxu0 0.0
        %419 = vmatpush1.msra.mxu0 0.0
        %420 = vmatprep.subr.mxu0 0.0
        %421 = vmatpush1.msra.mxu0 0.0
        %422 = vmatprep.subr.mxu0 0.0
        %423 = vmatpush1.msra.mxu0 0.0
        %424 = vmatprep.subr.mxu0 0.0
        %425 = vmatpush1.msra.mxu0 0.0
        %426 = vmatprep.subr.mxu0 0.0
        %427 = vmatpush1.msra.mxu0 0.0
        %428 = vmatprep.subr.mxu0 0.0
        %429 = vmatpush1.msra.mxu0 0.0
        %430 = vmatprep.subr.mxu0 0.0
        %431 = vmatpush1.msra.mxu0 0.0
        %432 = vmatprep.subr.mxu0 0.0
        %433 = vmatpush1.msra.mxu0 0.0
        %434 = vmatprep.subr.mxu0 0.0
        %435 = vmatpush1.msra.mxu0 0.0
        %436 = vmatprep.subr.mxu0 0.0
        %437 = vmatpush1.msra.mxu0 0.0
        %438 = vmatprep.subr.mxu0 0.0
        %439 = vmatpush1.msra.mxu0 0.0
        %440 = vmatprep.subr.mxu0 0.0
        %441 = vmatpush1.msra.mxu0 0.0
        %442 = vmatprep.subr.mxu0 0.0
        %443 = vmatpush1.msra.mxu0 0.0
        %444 = vmatprep.subr.mxu0 0.0
        %445 = vmatpush1.msra.mxu0 0.0
        %446 = vmatprep.subr.mxu0 0.0
        %447 = vmatpush1.msra.mxu0 0.0
        %448 = vmatprep.subr.mxu0 0.0
        %449 = vmatpush1.msra.mxu0 0.0
        %450 = vmatprep.subr.mxu0 0.0
        %451 = vmatpush1.msra.mxu0 0.0
        %452 = vmatprep.subr.mxu0 0.0
        %453 = vmatpush1.msra.mxu0 0.0
        %454 = vmatprep.subr.mxu0 0.0
        %455 = vmatpush1.msra.mxu0 0.0
        %456 = vmatprep.subr.mxu0 0.0
        %457 = vmatpush1.msra.mxu0 0.0
        %458 = vmatprep.subr.mxu0 0.0
        %459 = vmatpush1.msra.mxu0 0.0
        %460 = vmatprep.subr.mxu0 0.0
        %461 = vmatpush1.msra.mxu0 0.0
        %462 = vmatprep.subr.mxu0 0.0
        %463 = vmatpush1.msra.mxu0 0.0
        %464 = vmatprep.subr.mxu0 0.0
        %465 = vmatpush1.msra.mxu0 0.0
        %466 = vmatprep.subr.mxu0 0.0
        %467 = vmatpush1.msra.mxu0 0.0
        %468 = vmatprep.subr.mxu0 0.0
        %469 = vmatpush1.msra.mxu0 0.0
        %470 = vmatprep.subr.mxu0 0.0
        %471 = vmatpush1.msra.mxu0 0.0
        %472 = vmatprep.mubr.f32.mxu0 0.0
        %473 = vmatmul.mubr.f32.gmra.mrb[0].mxu0 %v399
        %v474 = vpop.f32.mrb[0].mxu0
        %v475 = vadd.f32 %v390, %v474
        %v476 = vpop.f32.mrb[0].mxu0
        %477 = vmatprep.mubr.f32.mxu0 0.0
        %478 = vmatmul.mubr.f32.gmra.mrb[0].mxu0 %v402
        %v479 = vpop.f32.mrb[0].mxu0
        %v480 = vadd.f32 %v395, %v479
        %v481 = vpop.f32.mrb[0].mxu0
        %482 = vdwg.mxu0
        %v483 = vld [vmem:[%s3] sm:$0xff]
        %v484 = vld [vmem:[%s3 + $0x8] sm:$0xff]
        %vm485 = vcmp.gt.f32.partialorder %v475, 0.0
        %vm486 = vcmp.gt.f32.partialorder %v480, 0.0
        %488 = vset.pattern.permute.xlu0 0
        %489 = vperm.xlu0 %488, %v483
        %v490 = vpop.permute.xlu0 %489
        %493 = vset.pattern.permute.xlu0 0
        %494 = vperm.xlu0 %493, %v484
        %v495 = vpop.permute.xlu0 %494
        %v497 = vmul.f32 %v490, %v475
        %v498 = vmul.f32 %v495, %v480
        %v499 = vsel %vm485, %v475, %v497
        %v500 = vsel %vm486, %v480, %v498
        %502 = vrot.lane.b32.xlu0 %v499, 73
        %v503 = vpop.permute.xlu0 %502
        %505 = vrot.lane.b32.xlu0 %v499, 9
        %v506 = vpop.permute.xlu0 %505
        %vm508 = vcmask 72704
        %v509 = vsel %vm508, %v503, %v506
        %v510 = vld [vmem:[%s10] sm:$0x1]
        %v512 = vlaneseq
        %v513 = vshrl.u32 %v512, 7
        %v514 = vsub.s32 0, %v513
        %v515 = vrot.slane %v510, %v514
        %v517 = vmul.f32 %v509, %v515
        %v518 = vld [vmem:[%s4] sm:$0xff]
        %519 = vrot.lane.b32.xlu0 %v499, 72
        %v520 = vpop.permute.xlu0 %519
        %522 = vrot.lane.b32.xlu0 %v499, 8
        %v523 = vpop.permute.xlu0 %522
        %vm525 = vcmask 64512
        %v526 = vsel %vm525, %v520, %v523
        %s527 = scalar_lea.vmem %s10, 1
        %v528 = vld [vmem:[%s527] sm:$0x1]
        %v530 = vlaneseq
        %v531 = vshrl.u32 %v530, 7
        %v532 = vsub.s32 0, %v531
        %v533 = vrot.slane %v528, %v532
        %v535 = vmul.f32 %v526, %v533
        %s536 = scalar_lea.vmem %s4, 8
        %v537 = vld [vmem:[%s536] sm:$0xff]
        %v539 = vsel %vm525, %v537, 0
        %541 = vmatprep.subr.mxu0 0.0
        %542 = vmatpush1.msra.mxu0 %v535
        %543 = vmatprep.subr.mxu0 0.0
        %544 = vmatpush1.msra.mxu0 0.0
        %545 = vmatprep.subr.mxu0 0.0
        %546 = vmatpush1.msra.mxu0 0.0
        %547 = vmatprep.subr.mxu0 0.0
        %548 = vmatpush1.msra.mxu0 0.0
        %549 = vmatprep.subr.mxu0 0.0
        %550 = vmatpush1.msra.mxu0 0.0
        %551 = vmatprep.subr.mxu0 0.0
        %552 = vmatpush1.msra.mxu0 0.0
        %553 = vmatprep.subr.mxu0 0.0
        %554 = vmatpush1.msra.mxu0 0.0
        %555 = vmatprep.subr.mxu0 0.0
        %556 = vmatpush1.msra.mxu0 0.0
        %557 = vmatprep.subr.mxu0 0.0
        %558 = vmatpush1.msra.mxu0 0.0
        %559 = vmatprep.subr.mxu0 0.0
        %560 = vmatpush1.msra.mxu0 0.0
        %561 = vmatprep.subr.mxu0 0.0
        %562 = vmatpush1.msra.mxu0 0.0
        %563 = vmatprep.subr.mxu0 0.0
        %564 = vmatpush1.msra.mxu0 0.0
        %565 = vmatprep.subr.mxu0 0.0
        %566 = vmatpush1.msra.mxu0 0.0
        %567 = vmatprep.subr.mxu0 0.0
        %568 = vmatpush1.msra.mxu0 0.0
        %569 = vmatprep.subr.mxu0 0.0
        %570 = vmatpush1.msra.mxu0 0.0
        %571 = vmatprep.subr.mxu0 0.0
        %572 = vmatpush1.msra.mxu0 0.0
        %573 = vmatprep.subr.mxu0 0.0
        %574 = vmatpush1.msra.mxu0 0.0
        %575 = vmatprep.subr.mxu0 0.0
        %576 = vmatpush1.msra.mxu0 0.0
        %577 = vmatprep.subr.mxu0 0.0
        %578 = vmatpush1.msra.mxu0 0.0
        %579 = vmatprep.subr.mxu0 0.0
        %580 = vmatpush1.msra.mxu0 0.0
        %581 = vmatprep.subr.mxu0 0.0
        %582 = vmatpush1.msra.mxu0 0.0
        %583 = vmatprep.subr.mxu0 0.0
        %584 = vmatpush1.msra.mxu0 0.0
        %585 = vmatprep.subr.mxu0 0.0
        %586 = vmatpush1.msra.mxu0 0.0
        %587 = vmatprep.subr.mxu0 0.0
        %588 = vmatpush1.msra.mxu0 0.0
        %589 = vmatprep.subr.mxu0 0.0
        %590 = vmatpush1.msra.mxu0 0.0
        %591 = vmatprep.subr.mxu0 0.0
        %592 = vmatpush1.msra.mxu0 0.0
        %593 = vmatprep.subr.mxu0 0.0
        %594 = vmatpush1.msra.mxu0 0.0
        %595 = vmatprep.subr.mxu0 0.0
        %596 = vmatpush1.msra.mxu0 0.0
        %597 = vmatprep.subr.mxu0 0.0
        %598 = vmatpush1.msra.mxu0 0.0
        %599 = vmatprep.subr.mxu0 0.0
        %600 = vmatpush1.msra.mxu0 0.0
        %601 = vmatprep.subr.mxu0 0.0
        %602 = vmatpush1.msra.mxu0 0.0
        %603 = vmatprep.subr.mxu0 0.0
        %604 = vmatpush1.msra.mxu0 0.0
        %605 = vmatprep.mubr.f32.mxu0 0.0
        %606 = vmatmul.mubr.f32.gmra.mrb[0].mxu0 %v539
        %v607 = vpop.f32.mrb[0].mxu0
        %v608 = vadd.f32 0.0, %v607
        %v609 = vpop.f32.mrb[0].mxu0
        %610 = vdwg.mxu0
        %v612 = vsel %vm525, %v518, 0
        %614 = vmatprep.subr.mxu0 0.0
        %615 = vmatpush1.msra.mxu0 %v517
        %616 = vmatprep.subr.mxu0 0.0
        %617 = vmatpush1.msra.mxu0 0.0
        %618 = vmatprep.subr.mxu0 0.0
        %619 = vmatpush1.msra.mxu0 0.0
        %620 = vmatprep.subr.mxu0 0.0
        %621 = vmatpush1.msra.mxu0 0.0
        %622 = vmatprep.subr.mxu0 0.0
        %623 = vmatpush1.msra.mxu0 0.0
        %624 = vmatprep.subr.mxu0 0.0
        %625 = vmatpush1.msra.mxu0 0.0
        %626 = vmatprep.subr.mxu0 0.0
        %627 = vmatpush1.msra.mxu0 0.0
        %628 = vmatprep.subr.mxu0 0.0
        %629 = vmatpush1.msra.mxu0 0.0
        %630 = vmatprep.subr.mxu0 0.0
        %631 = vmatpush1.msra.mxu0 0.0
        %632 = vmatprep.subr.mxu0 0.0
        %633 = vmatpush1.msra.mxu0 0.0
        %634 = vmatprep.subr.mxu0 0.0
        %635 = vmatpush1.msra.mxu0 0.0
        %636 = vmatprep.subr.mxu0 0.0
        %637 = vmatpush1.msra.mxu0 0.0
        %638 = vmatprep.subr.mxu0 0.0
        %639 = vmatpush1.msra.mxu0 0.0
        %640 = vmatprep.subr.mxu0 0.0
        %641 = vmatpush1.msra.mxu0 0.0
        %642 = vmatprep.subr.mxu0 0.0
        %643 = vmatpush1.msra.mxu0 0.0
        %644 = vmatprep.subr.mxu0 0.0
        %645 = vmatpush1.msra.mxu0 0.0
        %646 = vmatprep.subr.mxu0 0.0
        %647 = vmatpush1.msra.mxu0 0.0
        %648 = vmatprep.subr.mxu0 0.0
        %649 = vmatpush1.msra.mxu0 0.0
        %650 = vmatprep.subr.mxu0 0.0
        %651 = vmatpush1.msra.mxu0 0.0
        %652 = vmatprep.subr.mxu0 0.0
        %653 = vmatpush1.msra.mxu0 0.0
        %654 = vmatprep.subr.mxu0 0.0
        %655 = vmatpush1.msra.mxu0 0.0
        %656 = vmatprep.subr.mxu0 0.0
        %657 = vmatpush1.msra.mxu0 0.0
        %658 = vmatprep.subr.mxu0 0.0
        %659 = vmatpush1.msra.mxu0 0.0
        %660 = vmatprep.subr.mxu0 0.0
        %661 = vmatpush1.msra.mxu0 0.0
        %662 = vmatprep.subr.mxu0 0.0
        %663 = vmatpush1.msra.mxu0 0.0
        %664 = vmatprep.subr.mxu0 0.0
        %665 = vmatpush1.msra.mxu0 0.0
        %666 = vmatprep.subr.mxu0 0.0
        %667 = vmatpush1.msra.mxu0 0.0
        %668 = vmatprep.subr.mxu0 0.0
        %669 = vmatpush1.msra.mxu0 0.0
        %670 = vmatprep.subr.mxu0 0.0
        %671 = vmatpush1.msra.mxu0 0.0
        %672 = vmatprep.subr.mxu0 0.0
        %673 = vmatpush1.msra.mxu0 0.0
        %674 = vmatprep.subr.mxu0 0.0
        %675 = vmatpush1.msra.mxu0 0.0
        %676 = vmatprep.subr.mxu0 0.0
        %677 = vmatpush1.msra.mxu0 0.0
        %678 = vmatprep.mubr.f32.mxu0 0.0
        %679 = vmatmul.mubr.f32.gmra.mrb[0].mxu0 %v612
        %v680 = vpop.f32.mrb[0].mxu0
        %v681 = vadd.f32 %v608, %v680
        %v682 = vpop.f32.mrb[0].mxu0
        %683 = vdwg.mxu0
        %684 = vrot.lane.b32.xlu0 %v499, 71
        %v685 = vpop.permute.xlu0 %684
        %687 = vrot.lane.b32.xlu0 %v499, 7
        %v688 = vpop.permute.xlu0 %687
        %vm690 = vcmask 56320
        %v691 = vsel %vm690, %v685, %v688
        %s692 = scalar_lea.vmem %s10, 2
        %v693 = vld [vmem:[%s692] sm:$0x1]
        %v695 = vlaneseq
        %v696 = vshrl.u32 %v695, 7
        %v697 = vsub.s32 0, %v696
        %v698 = vrot.slane %v693, %v697
        %v700 = vmul.f32 %v691, %v698
        %s701 = scalar_lea.vmem %s4, 16
        %v702 = vld [vmem:[%s701] sm:$0xff]
        %v704 = vsel %vm525, %v702, 0
        %706 = vmatprep.subr.mxu0 0.0
        %707 = vmatpush1.msra.mxu0 %v700
        %708 = vmatprep.subr.mxu0 0.0
        %709 = vmatpush1.msra.mxu0 0.0
        %710 = vmatprep.subr.mxu0 0.0
        %711 = vmatpush1.msra.mxu0 0.0
        %712 = vmatprep.subr.mxu0 0.0
        %713 = vmatpush1.msra.mxu0 0.0
        %714 = vmatprep.subr.mxu0 0.0
        %715 = vmatpush1.msra.mxu0 0.0
        %716 = vmatprep.subr.mxu0 0.0
        %717 = vmatpush1.msra.mxu0 0.0
        %718 = vmatprep.subr.mxu0 0.0
        %719 = vmatpush1.msra.mxu0 0.0
        %720 = vmatprep.subr.mxu0 0.0
        %721 = vmatpush1.msra.mxu0 0.0
        %722 = vmatprep.subr.mxu0 0.0
        %723 = vmatpush1.msra.mxu0 0.0
        %724 = vmatprep.subr.mxu0 0.0
        %725 = vmatpush1.msra.mxu0 0.0
        %726 = vmatprep.subr.mxu0 0.0
        %727 = vmatpush1.msra.mxu0 0.0
        %728 = vmatprep.subr.mxu0 0.0
        %729 = vmatpush1.msra.mxu0 0.0
        %730 = vmatprep.subr.mxu0 0.0
        %731 = vmatpush1.msra.mxu0 0.0
        %732 = vmatprep.subr.mxu0 0.0
        %733 = vmatpush1.msra.mxu0 0.0
        %734 = vmatprep.subr.mxu0 0.0
        %735 = vmatpush1.msra.mxu0 0.0
        %736 = vmatprep.subr.mxu0 0.0
        %737 = vmatpush1.msra.mxu0 0.0
        %738 = vmatprep.subr.mxu0 0.0
        %739 = vmatpush1.msra.mxu0 0.0
        %740 = vmatprep.subr.mxu0 0.0
        %741 = vmatpush1.msra.mxu0 0.0
        %742 = vmatprep.subr.mxu0 0.0
        %743 = vmatpush1.msra.mxu0 0.0
        %744 = vmatprep.subr.mxu0 0.0
        %745 = vmatpush1.msra.mxu0 0.0
        %746 = vmatprep.subr.mxu0 0.0
        %747 = vmatpush1.msra.mxu0 0.0
        %748 = vmatprep.subr.mxu0 0.0
        %749 = vmatpush1.msra.mxu0 0.0
        %750 = vmatprep.subr.mxu0 0.0
        %751 = vmatpush1.msra.mxu0 0.0
        %752 = vmatprep.subr.mxu0 0.0
        %753 = vmatpush1.msra.mxu0 0.0
        %754 = vmatprep.subr.mxu0 0.0
        %755 = vmatpush1.msra.mxu0 0.0
        %756 = vmatprep.subr.mxu0 0.0
        %757 = vmatpush1.msra.mxu0 0.0
        %758 = vmatprep.subr.mxu0 0.0
        %759 = vmatpush1.msra.mxu0 0.0
        %760 = vmatprep.subr.mxu0 0.0
        %761 = vmatpush1.msra.mxu0 0.0
        %762 = vmatprep.subr.mxu0 0.0
        %763 = vmatpush1.msra.mxu0 0.0
        %764 = vmatprep.subr.mxu0 0.0
        %765 = vmatpush1.msra.mxu0 0.0
        %766 = vmatprep.subr.mxu0 0.0
        %767 = vmatpush1.msra.mxu0 0.0
        %768 = vmatprep.subr.mxu0 0.0
        %769 = vmatpush1.msra.mxu0 0.0
        %770 = vmatprep.mubr.f32.mxu0 0.0
        %771 = vmatmul.mubr.f32.gmra.mrb[0].mxu0 %v704
        %v772 = vpop.f32.mrb[0].mxu0
        %v773 = vadd.f32 0.0, %v772
        %v774 = vpop.f32.mrb[0].mxu0
        %775 = vdwg.mxu0
        %v776 = vadd.f32 %v681, %v773
        %777 = vrot.lane.b32.xlu0 %v499, 65
        %v778 = vpop.permute.xlu0 %777
        %780 = vrot.lane.b32.xlu0 %v499, 1
        %v781 = vpop.permute.xlu0 %780
        %vm783 = vcmask 7168
        %v784 = vsel %vm783, %v778, %v781
        %s785 = scalar_lea.vmem %s10, 3
        %v786 = vld [vmem:[%s785] sm:$0x1]
        %v788 = vlaneseq
        %v789 = vshrl.u32 %v788, 7
        %v790 = vsub.s32 0, %v789
        %v791 = vrot.slane %v786, %v790
        %v793 = vmul.f32 %v784, %v791
        %s794 = scalar_lea.vmem %s4, 24
        %v795 = vld [vmem:[%s794] sm:$0xff]
        %v797 = vsel %vm525, %v795, 0
        %799 = vmatprep.subr.mxu0 0.0
        %800 = vmatpush1.msra.mxu0 %v793
        %801 = vmatprep.subr.mxu0 0.0
        %802 = vmatpush1.msra.mxu0 0.0
        %803 = vmatprep.subr.mxu0 0.0
        %804 = vmatpush1.msra.mxu0 0.0
        %805 = vmatprep.subr.mxu0 0.0
        %806 = vmatpush1.msra.mxu0 0.0
        %807 = vmatprep.subr.mxu0 0.0
        %808 = vmatpush1.msra.mxu0 0.0
        %809 = vmatprep.subr.mxu0 0.0
        %810 = vmatpush1.msra.mxu0 0.0
        %811 = vmatprep.subr.mxu0 0.0
        %812 = vmatpush1.msra.mxu0 0.0
        %813 = vmatprep.subr.mxu0 0.0
        %814 = vmatpush1.msra.mxu0 0.0
        %815 = vmatprep.subr.mxu0 0.0
        %816 = vmatpush1.msra.mxu0 0.0
        %817 = vmatprep.subr.mxu0 0.0
        %818 = vmatpush1.msra.mxu0 0.0
        %819 = vmatprep.subr.mxu0 0.0
        %820 = vmatpush1.msra.mxu0 0.0
        %821 = vmatprep.subr.mxu0 0.0
        %822 = vmatpush1.msra.mxu0 0.0
        %823 = vmatprep.subr.mxu0 0.0
        %824 = vmatpush1.msra.mxu0 0.0
        %825 = vmatprep.subr.mxu0 0.0
        %826 = vmatpush1.msra.mxu0 0.0
        %827 = vmatprep.subr.mxu0 0.0
        %828 = vmatpush1.msra.mxu0 0.0
        %829 = vmatprep.subr.mxu0 0.0
        %830 = vmatpush1.msra.mxu0 0.0
        %831 = vmatprep.subr.mxu0 0.0
        %832 = vmatpush1.msra.mxu0 0.0
        %833 = vmatprep.subr.mxu0 0.0
        %834 = vmatpush1.msra.mxu0 0.0
        %835 = vmatprep.subr.mxu0 0.0
        %836 = vmatpush1.msra.mxu0 0.0
        %837 = vmatprep.subr.mxu0 0.0
        %838 = vmatpush1.msra.mxu0 0.0
        %839 = vmatprep.subr.mxu0 0.0
        %840 = vmatpush1.msra.mxu0 0.0
        %841 = vmatprep.subr.mxu0 0.0
        %842 = vmatpush1.msra.mxu0 0.0
        %843 = vmatprep.subr.mxu0 0.0
        %844 = vmatpush1.msra.mxu0 0.0
        %845 = vmatprep.subr.mxu0 0.0
        %846 = vmatpush1.msra.mxu0 0.0
        %847 = vmatprep.subr.mxu0 0.0
        %848 = vmatpush1.msra.mxu0 0.0
        %849 = vmatprep.subr.mxu0 0.0
        %850 = vmatpush1.msra.mxu0 0.0
        %851 = vmatprep.subr.mxu0 0.0
        %852 = vmatpush1.msra.mxu0 0.0
        %853 = vmatprep.subr.mxu0 0.0
        %854 = vmatpush1.msra.mxu0 0.0
        %855 = vmatprep.subr.mxu0 0.0
        %856 = vmatpush1.msra.mxu0 0.0
        %857 = vmatprep.subr.mxu0 0.0
        %858 = vmatpush1.msra.mxu0 0.0
        %859 = vmatprep.subr.mxu0 0.0
        %860 = vmatpush1.msra.mxu0 0.0
        %861 = vmatprep.subr.mxu0 0.0
        %862 = vmatpush1.msra.mxu0 0.0
        %863 = vmatprep.mubr.f32.mxu0 0.0
        %864 = vmatmul.mubr.f32.gmra.mrb[0].mxu0 %v797
        %v865 = vpop.f32.mrb[0].mxu0
        %v866 = vadd.f32 0.0, %v865
        %v867 = vpop.f32.mrb[0].mxu0
        %868 = vdwg.mxu0
        %v869 = vadd.f32 %v776, %v866
        %s870 = scalar_lea.vmem %s4, 32
        %v871 = vld [vmem:[%s870] sm:$0xff]
        %v873 = vsel %vm525, %v871, 0
        %875 = vmatprep.subr.mxu0 0.0
        %876 = vmatpush1.msra.mxu0 %v499
        %877 = vmatprep.subr.mxu0 0.0
        %878 = vmatpush1.msra.mxu0 0.0
        %879 = vmatprep.subr.mxu0 0.0
        %880 = vmatpush1.msra.mxu0 0.0
        %881 = vmatprep.subr.mxu0 0.0
        %882 = vmatpush1.msra.mxu0 0.0
        %883 = vmatprep.subr.mxu0 0.0
        %884 = vmatpush1.msra.mxu0 0.0
        %885 = vmatprep.subr.mxu0 0.0
        %886 = vmatpush1.msra.mxu0 0.0
        %887 = vmatprep.subr.mxu0 0.0
        %888 = vmatpush1.msra.mxu0 0.0
        %889 = vmatprep.subr.mxu0 0.0
        %890 = vmatpush1.msra.mxu0 0.0
        %891 = vmatprep.subr.mxu0 0.0
        %892 = vmatpush1.msra.mxu0 0.0
        %893 = vmatprep.subr.mxu0 0.0
        %894 = vmatpush1.msra.mxu0 0.0
        %895 = vmatprep.subr.mxu0 0.0
        %896 = vmatpush1.msra.mxu0 0.0
        %897 = vmatprep.subr.mxu0 0.0
        %898 = vmatpush1.msra.mxu0 0.0
        %899 = vmatprep.subr.mxu0 0.0
        %900 = vmatpush1.msra.mxu0 0.0
        %901 = vmatprep.subr.mxu0 0.0
        %902 = vmatpush1.msra.mxu0 0.0
        %903 = vmatprep.subr.mxu0 0.0
        %904 = vmatpush1.msra.mxu0 0.0
        %905 = vmatprep.subr.mxu0 0.0
        %906 = vmatpush1.msra.mxu0 0.0
        %907 = vmatprep.subr.mxu0 0.0
        %908 = vmatpush1.msra.mxu0 0.0
        %909 = vmatprep.subr.mxu0 0.0
        %910 = vmatpush1.msra.mxu0 0.0
        %911 = vmatprep.subr.mxu0 0.0
        %912 = vmatpush1.msra.mxu0 0.0
        %913 = vmatprep.subr.mxu0 0.0
        %914 = vmatpush1.msra.mxu0 0.0
        %915 = vmatprep.subr.mxu0 0.0
        %916 = vmatpush1.msra.mxu0 0.0
        %917 = vmatprep.subr.mxu0 0.0
        %918 = vmatpush1.msra.mxu0 0.0
        %919 = vmatprep.subr.mxu0 0.0
        %920 = vmatpush1.msra.mxu0 0.0
        %921 = vmatprep.subr.mxu0 0.0
        %922 = vmatpush1.msra.mxu0 0.0
        %923 = vmatprep.subr.mxu0 0.0
        %924 = vmatpush1.msra.mxu0 0.0
        %925 = vmatprep.subr.mxu0 0.0
        %926 = vmatpush1.msra.mxu0 0.0
        %927 = vmatprep.subr.mxu0 0.0
        %928 = vmatpush1.msra.mxu0 0.0
        %929 = vmatprep.subr.mxu0 0.0
        %930 = vmatpush1.msra.mxu0 0.0
        %931 = vmatprep.subr.mxu0 0.0
        %932 = vmatpush1.msra.mxu0 0.0
        %933 = vmatprep.subr.mxu0 0.0
        %934 = vmatpush1.msra.mxu0 0.0
        %935 = vmatprep.subr.mxu0 0.0
        %936 = vmatpush1.msra.mxu0 0.0
        %937 = vmatprep.subr.mxu0 0.0
        %938 = vmatpush1.msra.mxu0 0.0
        %939 = vmatprep.mubr.f32.mxu0 0.0
        %940 = vmatmul.mubr.f32.gmra.mrb[0].mxu0 %v873
        %v941 = vpop.f32.mrb[0].mxu0
        %v942 = vadd.f32 0.0, %v941
        %v943 = vpop.f32.mrb[0].mxu0
        %944 = vdwg.mxu0
        %v945 = vadd.f32 %v869, %v942
        %946 = vrot.lane.b32.xlu0 %v499, 127
        %v947 = vpop.permute.xlu0 %946
        %949 = vrot.lane.b32.xlu0 %v499, 63
        %v950 = vpop.permute.xlu0 %949
        %vm952 = vcmask 515072
        %v953 = vsel %vm952, %v947, %v950
        %s954 = scalar_lea.vmem %s10, 5
        %v955 = vld [vmem:[%s954] sm:$0x1]
        %v957 = vlaneseq
        %v958 = vshrl.u32 %v957, 7
        %v959 = vsub.s32 0, %v958
        %v960 = vrot.slane %v955, %v959
        %v962 = vmul.f32 %v953, %v960
        %s963 = scalar_lea.vmem %s4, 40
        %v964 = vld [vmem:[%s963] sm:$0xff]
        %v966 = vsel %vm525, %v964, 0
        %968 = vmatprep.subr.mxu0 0.0
        %969 = vmatpush1.msra.mxu0 %v962
        %970 = vmatprep.subr.mxu0 0.0
        %971 = vmatpush1.msra.mxu0 0.0
        %972 = vmatprep.subr.mxu0 0.0
        %973 = vmatpush1.msra.mxu0 0.0
        %974 = vmatprep.subr.mxu0 0.0
        %975 = vmatpush1.msra.mxu0 0.0
        %976 = vmatprep.subr.mxu0 0.0
        %977 = vmatpush1.msra.mxu0 0.0
        %978 = vmatprep.subr.mxu0 0.0
        %979 = vmatpush1.msra.mxu0 0.0
        %980 = vmatprep.subr.mxu0 0.0
        %981 = vmatpush1.msra.mxu0 0.0
        %982 = vmatprep.subr.mxu0 0.0
        %983 = vmatpush1.msra.mxu0 0.0
        %984 = vmatprep.subr.mxu0 0.0
        %985 = vmatpush1.msra.mxu0 0.0
        %986 = vmatprep.subr.mxu0 0.0
        %987 = vmatpush1.msra.mxu0 0.0
        %988 = vmatprep.subr.mxu0 0.0
        %989 = vmatpush1.msra.mxu0 0.0
        %990 = vmatprep.subr.mxu0 0.0
        %991 = vmatpush1.msra.mxu0 0.0
        %992 = vmatprep.subr.mxu0 0.0
        %993 = vmatpush1.msra.mxu0 0.0
        %994 = vmatprep.subr.mxu0 0.0
        %995 = vmatpush1.msra.mxu0 0.0
        %996 = vmatprep.subr.mxu0 0.0
        %997 = vmatpush1.msra.mxu0 0.0
        %998 = vmatprep.subr.mxu0 0.0
        %999 = vmatpush1.msra.mxu0 0.0
        %1000 = vmatprep.subr.mxu0 0.0
        %1001 = vmatpush1.msra.mxu0 0.0
        %1002 = vmatprep.subr.mxu0 0.0
        %1003 = vmatpush1.msra.mxu0 0.0
        %1004 = vmatprep.subr.mxu0 0.0
        %1005 = vmatpush1.msra.mxu0 0.0
        %1006 = vmatprep.subr.mxu0 0.0
        %1007 = vmatpush1.msra.mxu0 0.0
        %1008 = vmatprep.subr.mxu0 0.0
        %1009 = vmatpush1.msra.mxu0 0.0
        %1010 = vmatprep.subr.mxu0 0.0
        %1011 = vmatpush1.msra.mxu0 0.0
        %1012 = vmatprep.subr.mxu0 0.0
        %1013 = vmatpush1.msra.mxu0 0.0
        %1014 = vmatprep.subr.mxu0 0.0
        %1015 = vmatpush1.msra.mxu0 0.0
        %1016 = vmatprep.subr.mxu0 0.0
        %1017 = vmatpush1.msra.mxu0 0.0
        %1018 = vmatprep.subr.mxu0 0.0
        %1019 = vmatpush1.msra.mxu0 0.0
        %1020 = vmatprep.subr.mxu0 0.0
        %1021 = vmatpush1.msra.mxu0 0.0
        %1022 = vmatprep.subr.mxu0 0.0
        %1023 = vmatpush1.msra.mxu0 0.0
        %1024 = vmatprep.subr.mxu0 0.0
        %1025 = vmatpush1.msra.mxu0 0.0
        %1026 = vmatprep.subr.mxu0 0.0
        %1027 = vmatpush1.msra.mxu0 0.0
        %1028 = vmatprep.subr.mxu0 0.0
        %1029 = vmatpush1.msra.mxu0 0.0
        %1030 = vmatprep.subr.mxu0 0.0
        %1031 = vmatpush1.msra.mxu0 0.0
        %1032 = vmatprep.mubr.f32.mxu0 0.0
        %1033 = vmatmul.mubr.f32.gmra.mrb[0].mxu0 %v966
        %v1034 = vpop.f32.mrb[0].mxu0
        %v1035 = vadd.f32 0.0, %v1034
        %v1036 = vpop.f32.mrb[0].mxu0
        %1037 = vdwg.mxu0
        %v1038 = vadd.f32 %v945, %v1035
        %1039 = vrot.lane.b32.xlu0 %v499, 121
        %v1040 = vpop.permute.xlu0 %1039
        %1042 = vrot.lane.b32.xlu0 %v499, 57
        %v1043 = vpop.permute.xlu0 %1042
        %vm1045 = vcmask 465920
        %v1046 = vsel %vm1045, %v1040, %v1043
        %s1047 = scalar_lea.vmem %s10, 6
        %v1048 = vld [vmem:[%s1047] sm:$0x1]
        %v1050 = vlaneseq
        %v1051 = vshrl.u32 %v1050, 7
        %v1052 = vsub.s32 0, %v1051
        %v1053 = vrot.slane %v1048, %v1052
        %v1055 = vmul.f32 %v1046, %v1053
        %s1056 = scalar_lea.vmem %s4, 48
        %v1057 = vld [vmem:[%s1056] sm:$0xff]
        %v1059 = vsel %vm525, %v1057, 0
        %1061 = vmatprep.subr.mxu0 0.0
        %1062 = vmatpush1.msra.mxu0 %v1055
        %1063 = vmatprep.subr.mxu0 0.0
        %1064 = vmatpush1.msra.mxu0 0.0
        %1065 = vmatprep.subr.mxu0 0.0
        %1066 = vmatpush1.msra.mxu0 0.0
        %1067 = vmatprep.subr.mxu0 0.0
        %1068 = vmatpush1.msra.mxu0 0.0
        %1069 = vmatprep.subr.mxu0 0.0
        %1070 = vmatpush1.msra.mxu0 0.0
        %1071 = vmatprep.subr.mxu0 0.0
        %1072 = vmatpush1.msra.mxu0 0.0
        %1073 = vmatprep.subr.mxu0 0.0
        %1074 = vmatpush1.msra.mxu0 0.0
        %1075 = vmatprep.subr.mxu0 0.0
        %1076 = vmatpush1.msra.mxu0 0.0
        %1077 = vmatprep.subr.mxu0 0.0
        %1078 = vmatpush1.msra.mxu0 0.0
        %1079 = vmatprep.subr.mxu0 0.0
        %1080 = vmatpush1.msra.mxu0 0.0
        %1081 = vmatprep.subr.mxu0 0.0
        %1082 = vmatpush1.msra.mxu0 0.0
        %1083 = vmatprep.subr.mxu0 0.0
        %1084 = vmatpush1.msra.mxu0 0.0
        %1085 = vmatprep.subr.mxu0 0.0
        %1086 = vmatpush1.msra.mxu0 0.0
        %1087 = vmatprep.subr.mxu0 0.0
        %1088 = vmatpush1.msra.mxu0 0.0
        %1089 = vmatprep.subr.mxu0 0.0
        %1090 = vmatpush1.msra.mxu0 0.0
        %1091 = vmatprep.subr.mxu0 0.0
        %1092 = vmatpush1.msra.mxu0 0.0
        %1093 = vmatprep.subr.mxu0 0.0
        %1094 = vmatpush1.msra.mxu0 0.0
        %1095 = vmatprep.subr.mxu0 0.0
        %1096 = vmatpush1.msra.mxu0 0.0
        %1097 = vmatprep.subr.mxu0 0.0
        %1098 = vmatpush1.msra.mxu0 0.0
        %1099 = vmatprep.subr.mxu0 0.0
        %1100 = vmatpush1.msra.mxu0 0.0
        %1101 = vmatprep.subr.mxu0 0.0
        %1102 = vmatpush1.msra.mxu0 0.0
        %1103 = vmatprep.subr.mxu0 0.0
        %1104 = vmatpush1.msra.mxu0 0.0
        %1105 = vmatprep.subr.mxu0 0.0
        %1106 = vmatpush1.msra.mxu0 0.0
        %1107 = vmatprep.subr.mxu0 0.0
        %1108 = vmatpush1.msra.mxu0 0.0
        %1109 = vmatprep.subr.mxu0 0.0
        %1110 = vmatpush1.msra.mxu0 0.0
        %1111 = vmatprep.subr.mxu0 0.0
        %1112 = vmatpush1.msra.mxu0 0.0
        %1113 = vmatprep.subr.mxu0 0.0
        %1114 = vmatpush1.msra.mxu0 0.0
        %1115 = vmatprep.subr.mxu0 0.0
        %1116 = vmatpush1.msra.mxu0 0.0
        %1117 = vmatprep.subr.mxu0 0.0
        %1118 = vmatpush1.msra.mxu0 0.0
        %1119 = vmatprep.subr.mxu0 0.0
        %1120 = vmatpush1.msra.mxu0 0.0
        %1121 = vmatprep.subr.mxu0 0.0
        %1122 = vmatpush1.msra.mxu0 0.0
        %1123 = vmatprep.subr.mxu0 0.0
        %1124 = vmatpush1.msra.mxu0 0.0
        %1125 = vmatprep.mubr.f32.mxu0 0.0
        %1126 = vmatmul.mubr.f32.gmra.mrb[0].mxu0 %v1059
        %v1127 = vpop.f32.mrb[0].mxu0
        %v1128 = vadd.f32 0.0, %v1127
        %v1129 = vpop.f32.mrb[0].mxu0
        %1130 = vdwg.mxu0
        %v1131 = vadd.f32 %v1038, %v1128
        %1132 = vrot.lane.b32.xlu0 %v499, 120
        %v1133 = vpop.permute.xlu0 %1132
        %1135 = vrot.lane.b32.xlu0 %v499, 56
        %v1136 = vpop.permute.xlu0 %1135
        %vm1138 = vcmask 457728
        %v1139 = vsel %vm1138, %v1133, %v1136
        %s1140 = scalar_lea.vmem %s10, 7
        %v1141 = vld [vmem:[%s1140] sm:$0x1]
        %v1143 = vlaneseq
        %v1144 = vshrl.u32 %v1143, 7
        %v1145 = vsub.s32 0, %v1144
        %v1146 = vrot.slane %v1141, %v1145
        %v1148 = vmul.f32 %v1139, %v1146
        %s1149 = scalar_lea.vmem %s4, 56
        %v1150 = vld [vmem:[%s1149] sm:$0xff]
        %v1152 = vsel %vm525, %v1150, 0
        %1154 = vmatprep.subr.mxu0 0.0
        %1155 = vmatpush1.msra.mxu0 %v1148
        %1156 = vmatprep.subr.mxu0 0.0
        %1157 = vmatpush1.msra.mxu0 0.0
        %1158 = vmatprep.subr.mxu0 0.0
        %1159 = vmatpush1.msra.mxu0 0.0
        %1160 = vmatprep.subr.mxu0 0.0
        %1161 = vmatpush1.msra.mxu0 0.0
        %1162 = vmatprep.subr.mxu0 0.0
        %1163 = vmatpush1.msra.mxu0 0.0
        %1164 = vmatprep.subr.mxu0 0.0
        %1165 = vmatpush1.msra.mxu0 0.0
        %1166 = vmatprep.subr.mxu0 0.0
        %1167 = vmatpush1.msra.mxu0 0.0
        %1168 = vmatprep.subr.mxu0 0.0
        %1169 = vmatpush1.msra.mxu0 0.0
        %1170 = vmatprep.subr.mxu0 0.0
        %1171 = vmatpush1.msra.mxu0 0.0
        %1172 = vmatprep.subr.mxu0 0.0
        %1173 = vmatpush1.msra.mxu0 0.0
        %1174 = vmatprep.subr.mxu0 0.0
        %1175 = vmatpush1.msra.mxu0 0.0
        %1176 = vmatprep.subr.mxu0 0.0
        %1177 = vmatpush1.msra.mxu0 0.0
        %1178 = vmatprep.subr.mxu0 0.0
        %1179 = vmatpush1.msra.mxu0 0.0
        %1180 = vmatprep.subr.mxu0 0.0
        %1181 = vmatpush1.msra.mxu0 0.0
        %1182 = vmatprep.subr.mxu0 0.0
        %1183 = vmatpush1.msra.mxu0 0.0
        %1184 = vmatprep.subr.mxu0 0.0
        %1185 = vmatpush1.msra.mxu0 0.0
        %1186 = vmatprep.subr.mxu0 0.0
        %1187 = vmatpush1.msra.mxu0 0.0
        %1188 = vmatprep.subr.mxu0 0.0
        %1189 = vmatpush1.msra.mxu0 0.0
        %1190 = vmatprep.subr.mxu0 0.0
        %1191 = vmatpush1.msra.mxu0 0.0
        %1192 = vmatprep.subr.mxu0 0.0
        %1193 = vmatpush1.msra.mxu0 0.0
        %1194 = vmatprep.subr.mxu0 0.0
        %1195 = vmatpush1.msra.mxu0 0.0
        %1196 = vmatprep.subr.mxu0 0.0
        %1197 = vmatpush1.msra.mxu0 0.0
        %1198 = vmatprep.subr.mxu0 0.0
        %1199 = vmatpush1.msra.mxu0 0.0
        %1200 = vmatprep.subr.mxu0 0.0
        %1201 = vmatpush1.msra.mxu0 0.0
        %1202 = vmatprep.subr.mxu0 0.0
        %1203 = vmatpush1.msra.mxu0 0.0
        %1204 = vmatprep.subr.mxu0 0.0
        %1205 = vmatpush1.msra.mxu0 0.0
        %1206 = vmatprep.subr.mxu0 0.0
        %1207 = vmatpush1.msra.mxu0 0.0
        %1208 = vmatprep.subr.mxu0 0.0
        %1209 = vmatpush1.msra.mxu0 0.0
        %1210 = vmatprep.subr.mxu0 0.0
        %1211 = vmatpush1.msra.mxu0 0.0
        %1212 = vmatprep.subr.mxu0 0.0
        %1213 = vmatpush1.msra.mxu0 0.0
        %1214 = vmatprep.subr.mxu0 0.0
        %1215 = vmatpush1.msra.mxu0 0.0
        %1216 = vmatprep.subr.mxu0 0.0
        %1217 = vmatpush1.msra.mxu0 0.0
        %1218 = vmatprep.mubr.f32.mxu0 0.0
        %1219 = vmatmul.mubr.f32.gmra.mrb[0].mxu0 %v1152
        %v1220 = vpop.f32.mrb[0].mxu0
        %v1221 = vadd.f32 0.0, %v1220
        %v1222 = vpop.f32.mrb[0].mxu0
        %1223 = vdwg.mxu0
        %v1224 = vadd.f32 %v1131, %v1221
        %1225 = vrot.lane.b32.xlu0 %v499, 119
        %v1226 = vpop.permute.xlu0 %1225
        %1228 = vrot.lane.b32.xlu0 %v499, 55
        %v1229 = vpop.permute.xlu0 %1228
        %vm1231 = vcmask 449536
        %v1232 = vsel %vm1231, %v1226, %v1229
        %s1233 = scalar_lea.vmem %s10, 8
        %v1234 = vld [vmem:[%s1233] sm:$0x1]
        %v1236 = vlaneseq
        %v1237 = vshrl.u32 %v1236, 7
        %v1238 = vsub.s32 0, %v1237
        %v1239 = vrot.slane %v1234, %v1238
        %v1241 = vmul.f32 %v1232, %v1239
        %s1242 = scalar_lea.vmem %s4, 64
        %v1243 = vld [vmem:[%s1242] sm:$0xff]
        %v1245 = vsel %vm525, %v1243, 0
        %1247 = vmatprep.subr.mxu0 0.0
        %1248 = vmatpush1.msra.mxu0 %v1241
        %1249 = vmatprep.subr.mxu0 0.0
        %1250 = vmatpush1.msra.mxu0 0.0
        %1251 = vmatprep.subr.mxu0 0.0
        %1252 = vmatpush1.msra.mxu0 0.0
        %1253 = vmatprep.subr.mxu0 0.0
        %1254 = vmatpush1.msra.mxu0 0.0
        %1255 = vmatprep.subr.mxu0 0.0
        %1256 = vmatpush1.msra.mxu0 0.0
        %1257 = vmatprep.subr.mxu0 0.0
        %1258 = vmatpush1.msra.mxu0 0.0
        %1259 = vmatprep.subr.mxu0 0.0
        %1260 = vmatpush1.msra.mxu0 0.0
        %1261 = vmatprep.subr.mxu0 0.0
        %1262 = vmatpush1.msra.mxu0 0.0
        %1263 = vmatprep.subr.mxu0 0.0
        %1264 = vmatpush1.msra.mxu0 0.0
        %1265 = vmatprep.subr.mxu0 0.0
        %1266 = vmatpush1.msra.mxu0 0.0
        %1267 = vmatprep.subr.mxu0 0.0
        %1268 = vmatpush1.msra.mxu0 0.0
        %1269 = vmatprep.subr.mxu0 0.0
        %1270 = vmatpush1.msra.mxu0 0.0
        %1271 = vmatprep.subr.mxu0 0.0
        %1272 = vmatpush1.msra.mxu0 0.0
        %1273 = vmatprep.subr.mxu0 0.0
        %1274 = vmatpush1.msra.mxu0 0.0
        %1275 = vmatprep.subr.mxu0 0.0
        %1276 = vmatpush1.msra.mxu0 0.0
        %1277 = vmatprep.subr.mxu0 0.0
        %1278 = vmatpush1.msra.mxu0 0.0
        %1279 = vmatprep.subr.mxu0 0.0
        %1280 = vmatpush1.msra.mxu0 0.0
        %1281 = vmatprep.subr.mxu0 0.0
        %1282 = vmatpush1.msra.mxu0 0.0
        %1283 = vmatprep.subr.mxu0 0.0
        %1284 = vmatpush1.msra.mxu0 0.0
        %1285 = vmatprep.subr.mxu0 0.0
        %1286 = vmatpush1.msra.mxu0 0.0
        %1287 = vmatprep.subr.mxu0 0.0
        %1288 = vmatpush1.msra.mxu0 0.0
        %1289 = vmatprep.subr.mxu0 0.0
        %1290 = vmatpush1.msra.mxu0 0.0
        %1291 = vmatprep.subr.mxu0 0.0
        %1292 = vmatpush1.msra.mxu0 0.0
        %1293 = vmatprep.subr.mxu0 0.0
        %1294 = vmatpush1.msra.mxu0 0.0
        %1295 = vmatprep.subr.mxu0 0.0
        %1296 = vmatpush1.msra.mxu0 0.0
        %1297 = vmatprep.subr.mxu0 0.0
        %1298 = vmatpush1.msra.mxu0 0.0
        %1299 = vmatprep.subr.mxu0 0.0
        %1300 = vmatpush1.msra.mxu0 0.0
        %1301 = vmatprep.subr.mxu0 0.0
        %1302 = vmatpush1.msra.mxu0 0.0
        %1303 = vmatprep.subr.mxu0 0.0
        %1304 = vmatpush1.msra.mxu0 0.0
        %1305 = vmatprep.subr.mxu0 0.0
        %1306 = vmatpush1.msra.mxu0 0.0
        %1307 = vmatprep.subr.mxu0 0.0
        %1308 = vmatpush1.msra.mxu0 0.0
        %1309 = vmatprep.subr.mxu0 0.0
        %1310 = vmatpush1.msra.mxu0 0.0
        %1311 = vmatprep.mubr.f32.mxu0 0.0
        %1312 = vmatmul.mubr.f32.gmra.mrb[0].mxu0 %v1245
        %v1313 = vpop.f32.mrb[0].mxu0
        %v1314 = vadd.f32 0.0, %v1313
        %v1315 = vpop.f32.mrb[0].mxu0
        %1316 = vdwg.mxu0
        %v1317 = vadd.f32 %v1224, %v1314
        %v1318 = vld [vmem:[%s5] sm:$0xff]
        %1320 = vset.pattern.permute.xlu0 0
        %1321 = vperm.xlu0 %1320, %v1318
        %v1322 = vpop.permute.xlu0 %1321
        %v1324 = vadd.f32 %v1317, %v1322
        %v1325 = vld [vmem:[%s6] sm:$0xff]
        %vm1326 = vcmp.gt.f32.partialorder %v1324, 0.0
        %1328 = vset.pattern.permute.xlu0 0
        %1329 = vperm.xlu0 %1328, %v1325
        %v1330 = vpop.permute.xlu0 %1329
        %v1332 = vmul.f32 %v1330, %v1324
        %v1333 = vsel %vm1326, %v1324, %v1332
        %1335 = vrot.lane.b32.xlu0 %v1333, 73
        %v1336 = vpop.permute.xlu0 %1335
        %1338 = vrot.lane.b32.xlu0 %v1333, 9
        %v1339 = vpop.permute.xlu0 %1338
        %v1341 = vsel %vm508, %v1336, %v1339
        %v1342 = vmul.f32 %v1341, %v515
        %v1343 = vld [vmem:[%s7] sm:$0xff]
        %1344 = vrot.lane.b32.xlu0 %v1333, 72
        %v1345 = vpop.permute.xlu0 %1344
        %1347 = vrot.lane.b32.xlu0 %v1333, 8
        %v1348 = vpop.permute.xlu0 %1347
        %v1350 = vsel %vm525, %v1345, %v1348
        %v1351 = vmul.f32 %v1350, %v533
        %s1352 = scalar_lea.vmem %s7, 8
        %v1353 = vld [vmem:[%s1352] sm:$0xff]
        %v1355 = vsel %vm525, %v1353, 0
        %1357 = vmatprep.subr.mxu0 0.0
        %1358 = vmatpush1.msra.mxu0 %v1351
        %1359 = vmatprep.subr.mxu0 0.0
        %1360 = vmatpush1.msra.mxu0 0.0
        %1361 = vmatprep.subr.mxu0 0.0
        %1362 = vmatpush1.msra.mxu0 0.0
        %1363 = vmatprep.subr.mxu0 0.0
        %1364 = vmatpush1.msra.mxu0 0.0
        %1365 = vmatprep.subr.mxu0 0.0
        %1366 = vmatpush1.msra.mxu0 0.0
        %1367 = vmatprep.subr.mxu0 0.0
        %1368 = vmatpush1.msra.mxu0 0.0
        %1369 = vmatprep.subr.mxu0 0.0
        %1370 = vmatpush1.msra.mxu0 0.0
        %1371 = vmatprep.subr.mxu0 0.0
        %1372 = vmatpush1.msra.mxu0 0.0
        %1373 = vmatprep.subr.mxu0 0.0
        %1374 = vmatpush1.msra.mxu0 0.0
        %1375 = vmatprep.subr.mxu0 0.0
        %1376 = vmatpush1.msra.mxu0 0.0
        %1377 = vmatprep.subr.mxu0 0.0
        %1378 = vmatpush1.msra.mxu0 0.0
        %1379 = vmatprep.subr.mxu0 0.0
        %1380 = vmatpush1.msra.mxu0 0.0
        %1381 = vmatprep.subr.mxu0 0.0
        %1382 = vmatpush1.msra.mxu0 0.0
        %1383 = vmatprep.subr.mxu0 0.0
        %1384 = vmatpush1.msra.mxu0 0.0
        %1385 = vmatprep.subr.mxu0 0.0
        %1386 = vmatpush1.msra.mxu0 0.0
        %1387 = vmatprep.subr.mxu0 0.0
        %1388 = vmatpush1.msra.mxu0 0.0
        %1389 = vmatprep.subr.mxu0 0.0
        %1390 = vmatpush1.msra.mxu0 0.0
        %1391 = vmatprep.subr.mxu0 0.0
        %1392 = vmatpush1.msra.mxu0 0.0
        %1393 = vmatprep.subr.mxu0 0.0
        %1394 = vmatpush1.msra.mxu0 0.0
        %1395 = vmatprep.subr.mxu0 0.0
        %1396 = vmatpush1.msra.mxu0 0.0
        %1397 = vmatprep.subr.mxu0 0.0
        %1398 = vmatpush1.msra.mxu0 0.0
        %1399 = vmatprep.subr.mxu0 0.0
        %1400 = vmatpush1.msra.mxu0 0.0
        %1401 = vmatprep.subr.mxu0 0.0
        %1402 = vmatpush1.msra.mxu0 0.0
        %1403 = vmatprep.subr.mxu0 0.0
        %1404 = vmatpush1.msra.mxu0 0.0
        %1405 = vmatprep.subr.mxu0 0.0
        %1406 = vmatpush1.msra.mxu0 0.0
        %1407 = vmatprep.subr.mxu0 0.0
        %1408 = vmatpush1.msra.mxu0 0.0
        %1409 = vmatprep.subr.mxu0 0.0
        %1410 = vmatpush1.msra.mxu0 0.0
        %1411 = vmatprep.subr.mxu0 0.0
        %1412 = vmatpush1.msra.mxu0 0.0
        %1413 = vmatprep.subr.mxu0 0.0
        %1414 = vmatpush1.msra.mxu0 0.0
        %1415 = vmatprep.subr.mxu0 0.0
        %1416 = vmatpush1.msra.mxu0 0.0
        %1417 = vmatprep.subr.mxu0 0.0
        %1418 = vmatpush1.msra.mxu0 0.0
        %1419 = vmatprep.subr.mxu0 0.0
        %1420 = vmatpush1.msra.mxu0 0.0
        %1421 = vmatprep.mubr.f32.mxu0 0.0
        %1422 = vmatmul.mubr.f32.gmra.mrb[0].mxu0 %v1355
        %v1423 = vpop.f32.mrb[0].mxu0
        %v1424 = vadd.f32 0.0, %v1423
        %v1425 = vpop.f32.mrb[0].mxu0
        %1426 = vdwg.mxu0
        %v1428 = vsel %vm525, %v1343, 0
        %1430 = vmatprep.subr.mxu0 0.0
        %1431 = vmatpush1.msra.mxu0 %v1342
        %1432 = vmatprep.subr.mxu0 0.0
        %1433 = vmatpush1.msra.mxu0 0.0
        %1434 = vmatprep.subr.mxu0 0.0
        %1435 = vmatpush1.msra.mxu0 0.0
        %1436 = vmatprep.subr.mxu0 0.0
        %1437 = vmatpush1.msra.mxu0 0.0
        %1438 = vmatprep.subr.mxu0 0.0
        %1439 = vmatpush1.msra.mxu0 0.0
        %1440 = vmatprep.subr.mxu0 0.0
        %1441 = vmatpush1.msra.mxu0 0.0
        %1442 = vmatprep.subr.mxu0 0.0
        %1443 = vmatpush1.msra.mxu0 0.0
        %1444 = vmatprep.subr.mxu0 0.0
        %1445 = vmatpush1.msra.mxu0 0.0
        %1446 = vmatprep.subr.mxu0 0.0
        %1447 = vmatpush1.msra.mxu0 0.0
        %1448 = vmatprep.subr.mxu0 0.0
        %1449 = vmatpush1.msra.mxu0 0.0
        %1450 = vmatprep.subr.mxu0 0.0
        %1451 = vmatpush1.msra.mxu0 0.0
        %1452 = vmatprep.subr.mxu0 0.0
        %1453 = vmatpush1.msra.mxu0 0.0
        %1454 = vmatprep.subr.mxu0 0.0
        %1455 = vmatpush1.msra.mxu0 0.0
        %1456 = vmatprep.subr.mxu0 0.0
        %1457 = vmatpush1.msra.mxu0 0.0
        %1458 = vmatprep.subr.mxu0 0.0
        %1459 = vmatpush1.msra.mxu0 0.0
        %1460 = vmatprep.subr.mxu0 0.0
        %1461 = vmatpush1.msra.mxu0 0.0
        %1462 = vmatprep.subr.mxu0 0.0
        %1463 = vmatpush1.msra.mxu0 0.0
        %1464 = vmatprep.subr.mxu0 0.0
        %1465 = vmatpush1.msra.mxu0 0.0
        %1466 = vmatprep.subr.mxu0 0.0
        %1467 = vmatpush1.msra.mxu0 0.0
        %1468 = vmatprep.subr.mxu0 0.0
        %1469 = vmatpush1.msra.mxu0 0.0
        %1470 = vmatprep.subr.mxu0 0.0
        %1471 = vmatpush1.msra.mxu0 0.0
        %1472 = vmatprep.subr.mxu0 0.0
        %1473 = vmatpush1.msra.mxu0 0.0
        %1474 = vmatprep.subr.mxu0 0.0
        %1475 = vmatpush1.msra.mxu0 0.0
        %1476 = vmatprep.subr.mxu0 0.0
        %1477 = vmatpush1.msra.mxu0 0.0
        %1478 = vmatprep.subr.mxu0 0.0
        %1479 = vmatpush1.msra.mxu0 0.0
        %1480 = vmatprep.subr.mxu0 0.0
        %1481 = vmatpush1.msra.mxu0 0.0
        %1482 = vmatprep.subr.mxu0 0.0
        %1483 = vmatpush1.msra.mxu0 0.0
        %1484 = vmatprep.subr.mxu0 0.0
        %1485 = vmatpush1.msra.mxu0 0.0
        %1486 = vmatprep.subr.mxu0 0.0
        %1487 = vmatpush1.msra.mxu0 0.0
        %1488 = vmatprep.subr.mxu0 0.0
        %1489 = vmatpush1.msra.mxu0 0.0
        %1490 = vmatprep.subr.mxu0 0.0
        %1491 = vmatpush1.msra.mxu0 0.0
        %1492 = vmatprep.subr.mxu0 0.0
        %1493 = vmatpush1.msra.mxu0 0.0
        %1494 = vmatprep.mubr.f32.mxu0 0.0
        %1495 = vmatmul.mubr.f32.gmra.mrb[0].mxu0 %v1428
        %v1496 = vpop.f32.mrb[0].mxu0
        %v1497 = vadd.f32 %v1424, %v1496
        %v1498 = vpop.f32.mrb[0].mxu0
        %1499 = vdwg.mxu0
        %1500 = vrot.lane.b32.xlu0 %v1333, 71
        %v1501 = vpop.permute.xlu0 %1500
        %1503 = vrot.lane.b32.xlu0 %v1333, 7
        %v1504 = vpop.permute.xlu0 %1503
        %v1506 = vsel %vm690, %v1501, %v1504
        %v1507 = vmul.f32 %v1506, %v698
        %s1508 = scalar_lea.vmem %s7, 16
        %v1509 = vld [vmem:[%s1508] sm:$0xff]
        %v1511 = vsel %vm525, %v1509, 0
        %1513 = vmatprep.subr.mxu0 0.0
        %1514 = vmatpush1.msra.mxu0 %v1507
        %1515 = vmatprep.subr.mxu0 0.0
        %1516 = vmatpush1.msra.mxu0 0.0
        %1517 = vmatprep.subr.mxu0 0.0
        %1518 = vmatpush1.msra.mxu0 0.0
        %1519 = vmatprep.subr.mxu0 0.0
        %1520 = vmatpush1.msra.mxu0 0.0
        %1521 = vmatprep.subr.mxu0 0.0
        %1522 = vmatpush1.msra.mxu0 0.0
        %1523 = vmatprep.subr.mxu0 0.0
        %1524 = vmatpush1.msra.mxu0 0.0
        %1525 = vmatprep.subr.mxu0 0.0
        %1526 = vmatpush1.msra.mxu0 0.0
        %1527 = vmatprep.subr.mxu0 0.0
        %1528 = vmatpush1.msra.mxu0 0.0
        %1529 = vmatprep.subr.mxu0 0.0
        %1530 = vmatpush1.msra.mxu0 0.0
        %1531 = vmatprep.subr.mxu0 0.0
        %1532 = vmatpush1.msra.mxu0 0.0
        %1533 = vmatprep.subr.mxu0 0.0
        %1534 = vmatpush1.msra.mxu0 0.0
        %1535 = vmatprep.subr.mxu0 0.0
        %1536 = vmatpush1.msra.mxu0 0.0
        %1537 = vmatprep.subr.mxu0 0.0
        %1538 = vmatpush1.msra.mxu0 0.0
        %1539 = vmatprep.subr.mxu0 0.0
        %1540 = vmatpush1.msra.mxu0 0.0
        %1541 = vmatprep.subr.mxu0 0.0
        %1542 = vmatpush1.msra.mxu0 0.0
        %1543 = vmatprep.subr.mxu0 0.0
        %1544 = vmatpush1.msra.mxu0 0.0
        %1545 = vmatprep.subr.mxu0 0.0
        %1546 = vmatpush1.msra.mxu0 0.0
        %1547 = vmatprep.subr.mxu0 0.0
        %1548 = vmatpush1.msra.mxu0 0.0
        %1549 = vmatprep.subr.mxu0 0.0
        %1550 = vmatpush1.msra.mxu0 0.0
        %1551 = vmatprep.subr.mxu0 0.0
        %1552 = vmatpush1.msra.mxu0 0.0
        %1553 = vmatprep.subr.mxu0 0.0
        %1554 = vmatpush1.msra.mxu0 0.0
        %1555 = vmatprep.subr.mxu0 0.0
        %1556 = vmatpush1.msra.mxu0 0.0
        %1557 = vmatprep.subr.mxu0 0.0
        %1558 = vmatpush1.msra.mxu0 0.0
        %1559 = vmatprep.subr.mxu0 0.0
        %1560 = vmatpush1.msra.mxu0 0.0
        %1561 = vmatprep.subr.mxu0 0.0
        %1562 = vmatpush1.msra.mxu0 0.0
        %1563 = vmatprep.subr.mxu0 0.0
        %1564 = vmatpush1.msra.mxu0 0.0
        %1565 = vmatprep.subr.mxu0 0.0
        %1566 = vmatpush1.msra.mxu0 0.0
        %1567 = vmatprep.subr.mxu0 0.0
        %1568 = vmatpush1.msra.mxu0 0.0
        %1569 = vmatprep.subr.mxu0 0.0
        %1570 = vmatpush1.msra.mxu0 0.0
        %1571 = vmatprep.subr.mxu0 0.0
        %1572 = vmatpush1.msra.mxu0 0.0
        %1573 = vmatprep.subr.mxu0 0.0
        %1574 = vmatpush1.msra.mxu0 0.0
        %1575 = vmatprep.subr.mxu0 0.0
        %1576 = vmatpush1.msra.mxu0 0.0
        %1577 = vmatprep.mubr.f32.mxu0 0.0
        %1578 = vmatmul.mubr.f32.gmra.mrb[0].mxu0 %v1511
        %v1579 = vpop.f32.mrb[0].mxu0
        %v1580 = vadd.f32 0.0, %v1579
        %v1581 = vpop.f32.mrb[0].mxu0
        %1582 = vdwg.mxu0
        %v1583 = vadd.f32 %v1497, %v1580
        %1584 = vrot.lane.b32.xlu0 %v1333, 65
        %v1585 = vpop.permute.xlu0 %1584
        %1587 = vrot.lane.b32.xlu0 %v1333, 1
        %v1588 = vpop.permute.xlu0 %1587
        %v1590 = vsel %vm783, %v1585, %v1588
        %v1591 = vmul.f32 %v1590, %v791
        %s1592 = scalar_lea.vmem %s7, 24
        %v1593 = vld [vmem:[%s1592] sm:$0xff]
        %v1595 = vsel %vm525, %v1593, 0
        %1597 = vmatprep.subr.mxu0 0.0
        %1598 = vmatpush1.msra.mxu0 %v1591
        %1599 = vmatprep.subr.mxu0 0.0
        %1600 = vmatpush1.msra.mxu0 0.0
        %1601 = vmatprep.subr.mxu0 0.0
        %1602 = vmatpush1.msra.mxu0 0.0
        %1603 = vmatprep.subr.mxu0 0.0
        %1604 = vmatpush1.msra.mxu0 0.0
        %1605 = vmatprep.subr.mxu0 0.0
        %1606 = vmatpush1.msra.mxu0 0.0
        %1607 = vmatprep.subr.mxu0 0.0
        %1608 = vmatpush1.msra.mxu0 0.0
        %1609 = vmatprep.subr.mxu0 0.0
        %1610 = vmatpush1.msra.mxu0 0.0
        %1611 = vmatprep.subr.mxu0 0.0
        %1612 = vmatpush1.msra.mxu0 0.0
        %1613 = vmatprep.subr.mxu0 0.0
        %1614 = vmatpush1.msra.mxu0 0.0
        %1615 = vmatprep.subr.mxu0 0.0
        %1616 = vmatpush1.msra.mxu0 0.0
        %1617 = vmatprep.subr.mxu0 0.0
        %1618 = vmatpush1.msra.mxu0 0.0
        %1619 = vmatprep.subr.mxu0 0.0
        %1620 = vmatpush1.msra.mxu0 0.0
        %1621 = vmatprep.subr.mxu0 0.0
        %1622 = vmatpush1.msra.mxu0 0.0
        %1623 = vmatprep.subr.mxu0 0.0
        %1624 = vmatpush1.msra.mxu0 0.0
        %1625 = vmatprep.subr.mxu0 0.0
        %1626 = vmatpush1.msra.mxu0 0.0
        %1627 = vmatprep.subr.mxu0 0.0
        %1628 = vmatpush1.msra.mxu0 0.0
        %1629 = vmatprep.subr.mxu0 0.0
        %1630 = vmatpush1.msra.mxu0 0.0
        %1631 = vmatprep.subr.mxu0 0.0
        %1632 = vmatpush1.msra.mxu0 0.0
        %1633 = vmatprep.subr.mxu0 0.0
        %1634 = vmatpush1.msra.mxu0 0.0
        %1635 = vmatprep.subr.mxu0 0.0
        %1636 = vmatpush1.msra.mxu0 0.0
        %1637 = vmatprep.subr.mxu0 0.0
        %1638 = vmatpush1.msra.mxu0 0.0
        %1639 = vmatprep.subr.mxu0 0.0
        %1640 = vmatpush1.msra.mxu0 0.0
        %1641 = vmatprep.subr.mxu0 0.0
        %1642 = vmatpush1.msra.mxu0 0.0
        %1643 = vmatprep.subr.mxu0 0.0
        %1644 = vmatpush1.msra.mxu0 0.0
        %1645 = vmatprep.subr.mxu0 0.0
        %1646 = vmatpush1.msra.mxu0 0.0
        %1647 = vmatprep.subr.mxu0 0.0
        %1648 = vmatpush1.msra.mxu0 0.0
        %1649 = vmatprep.subr.mxu0 0.0
        %1650 = vmatpush1.msra.mxu0 0.0
        %1651 = vmatprep.subr.mxu0 0.0
        %1652 = vmatpush1.msra.mxu0 0.0
        %1653 = vmatprep.subr.mxu0 0.0
        %1654 = vmatpush1.msra.mxu0 0.0
        %1655 = vmatprep.subr.mxu0 0.0
        %1656 = vmatpush1.msra.mxu0 0.0
        %1657 = vmatprep.subr.mxu0 0.0
        %1658 = vmatpush1.msra.mxu0 0.0
        %1659 = vmatprep.subr.mxu0 0.0
        %1660 = vmatpush1.msra.mxu0 0.0
        %1661 = vmatprep.mubr.f32.mxu0 0.0
        %1662 = vmatmul.mubr.f32.gmra.mrb[0].mxu0 %v1595
        %v1663 = vpop.f32.mrb[0].mxu0
        %v1664 = vadd.f32 0.0, %v1663
        %v1665 = vpop.f32.mrb[0].mxu0
        %1666 = vdwg.mxu0
        %v1667 = vadd.f32 %v1583, %v1664
        %s1668 = scalar_lea.vmem %s7, 32
        %v1669 = vld [vmem:[%s1668] sm:$0xff]
        %v1671 = vsel %vm525, %v1669, 0
        %1673 = vmatprep.subr.mxu0 0.0
        %1674 = vmatpush1.msra.mxu0 %v1333
        %1675 = vmatprep.subr.mxu0 0.0
        %1676 = vmatpush1.msra.mxu0 0.0
        %1677 = vmatprep.subr.mxu0 0.0
        %1678 = vmatpush1.msra.mxu0 0.0
        %1679 = vmatprep.subr.mxu0 0.0
        %1680 = vmatpush1.msra.mxu0 0.0
        %1681 = vmatprep.subr.mxu0 0.0
        %1682 = vmatpush1.msra.mxu0 0.0
        %1683 = vmatprep.subr.mxu0 0.0
        %1684 = vmatpush1.msra.mxu0 0.0
        %1685 = vmatprep.subr.mxu0 0.0
        %1686 = vmatpush1.msra.mxu0 0.0
        %1687 = vmatprep.subr.mxu0 0.0
        %1688 = vmatpush1.msra.mxu0 0.0
        %1689 = vmatprep.subr.mxu0 0.0
        %1690 = vmatpush1.msra.mxu0 0.0
        %1691 = vmatprep.subr.mxu0 0.0
        %1692 = vmatpush1.msra.mxu0 0.0
        %1693 = vmatprep.subr.mxu0 0.0
        %1694 = vmatpush1.msra.mxu0 0.0
        %1695 = vmatprep.subr.mxu0 0.0
        %1696 = vmatpush1.msra.mxu0 0.0
        %1697 = vmatprep.subr.mxu0 0.0
        %1698 = vmatpush1.msra.mxu0 0.0
        %1699 = vmatprep.subr.mxu0 0.0
        %1700 = vmatpush1.msra.mxu0 0.0
        %1701 = vmatprep.subr.mxu0 0.0
        %1702 = vmatpush1.msra.mxu0 0.0
        %1703 = vmatprep.subr.mxu0 0.0
        %1704 = vmatpush1.msra.mxu0 0.0
        %1705 = vmatprep.subr.mxu0 0.0
        %1706 = vmatpush1.msra.mxu0 0.0
        %1707 = vmatprep.subr.mxu0 0.0
        %1708 = vmatpush1.msra.mxu0 0.0
        %1709 = vmatprep.subr.mxu0 0.0
        %1710 = vmatpush1.msra.mxu0 0.0
        %1711 = vmatprep.subr.mxu0 0.0
        %1712 = vmatpush1.msra.mxu0 0.0
        %1713 = vmatprep.subr.mxu0 0.0
        %1714 = vmatpush1.msra.mxu0 0.0
        %1715 = vmatprep.subr.mxu0 0.0
        %1716 = vmatpush1.msra.mxu0 0.0
        %1717 = vmatprep.subr.mxu0 0.0
        %1718 = vmatpush1.msra.mxu0 0.0
        %1719 = vmatprep.subr.mxu0 0.0
        %1720 = vmatpush1.msra.mxu0 0.0
        %1721 = vmatprep.subr.mxu0 0.0
        %1722 = vmatpush1.msra.mxu0 0.0
        %1723 = vmatprep.subr.mxu0 0.0
        %1724 = vmatpush1.msra.mxu0 0.0
        %1725 = vmatprep.subr.mxu0 0.0
        %1726 = vmatpush1.msra.mxu0 0.0
        %1727 = vmatprep.subr.mxu0 0.0
        %1728 = vmatpush1.msra.mxu0 0.0
        %1729 = vmatprep.subr.mxu0 0.0
        %1730 = vmatpush1.msra.mxu0 0.0
        %1731 = vmatprep.subr.mxu0 0.0
        %1732 = vmatpush1.msra.mxu0 0.0
        %1733 = vmatprep.subr.mxu0 0.0
        %1734 = vmatpush1.msra.mxu0 0.0
        %1735 = vmatprep.subr.mxu0 0.0
        %1736 = vmatpush1.msra.mxu0 0.0
        %1737 = vmatprep.mubr.f32.mxu0 0.0
        %1738 = vmatmul.mubr.f32.gmra.mrb[0].mxu0 %v1671
        %v1739 = vpop.f32.mrb[0].mxu0
        %v1740 = vadd.f32 0.0, %v1739
        %v1741 = vpop.f32.mrb[0].mxu0
        %1742 = vdwg.mxu0
        %v1743 = vadd.f32 %v1667, %v1740
        %1744 = vrot.lane.b32.xlu0 %v1333, 127
        %v1745 = vpop.permute.xlu0 %1744
        %1747 = vrot.lane.b32.xlu0 %v1333, 63
        %v1748 = vpop.permute.xlu0 %1747
        %v1750 = vsel %vm952, %v1745, %v1748
        %v1751 = vmul.f32 %v1750, %v960
        %s1752 = scalar_lea.vmem %s7, 40
        %v1753 = vld [vmem:[%s1752] sm:$0xff]
        %v1755 = vsel %vm525, %v1753, 0
        %1757 = vmatprep.subr.mxu0 0.0
        %1758 = vmatpush1.msra.mxu0 %v1751
        %1759 = vmatprep.subr.mxu0 0.0
        %1760 = vmatpush1.msra.mxu0 0.0
        %1761 = vmatprep.subr.mxu0 0.0
        %1762 = vmatpush1.msra.mxu0 0.0
        %1763 = vmatprep.subr.mxu0 0.0
        %1764 = vmatpush1.msra.mxu0 0.0
        %1765 = vmatprep.subr.mxu0 0.0
        %1766 = vmatpush1.msra.mxu0 0.0
        %1767 = vmatprep.subr.mxu0 0.0
        %1768 = vmatpush1.msra.mxu0 0.0
        %1769 = vmatprep.subr.mxu0 0.0
        %1770 = vmatpush1.msra.mxu0 0.0
        %1771 = vmatprep.subr.mxu0 0.0
        %1772 = vmatpush1.msra.mxu0 0.0
        %1773 = vmatprep.subr.mxu0 0.0
        %1774 = vmatpush1.msra.mxu0 0.0
        %1775 = vmatprep.subr.mxu0 0.0
        %1776 = vmatpush1.msra.mxu0 0.0
        %1777 = vmatprep.subr.mxu0 0.0
        %1778 = vmatpush1.msra.mxu0 0.0
        %1779 = vmatprep.subr.mxu0 0.0
        %1780 = vmatpush1.msra.mxu0 0.0
        %1781 = vmatprep.subr.mxu0 0.0
        %1782 = vmatpush1.msra.mxu0 0.0
        %1783 = vmatprep.subr.mxu0 0.0
        %1784 = vmatpush1.msra.mxu0 0.0
        %1785 = vmatprep.subr.mxu0 0.0
        %1786 = vmatpush1.msra.mxu0 0.0
        %1787 = vmatprep.subr.mxu0 0.0
        %1788 = vmatpush1.msra.mxu0 0.0
        %1789 = vmatprep.subr.mxu0 0.0
        %1790 = vmatpush1.msra.mxu0 0.0
        %1791 = vmatprep.subr.mxu0 0.0
        %1792 = vmatpush1.msra.mxu0 0.0
        %1793 = vmatprep.subr.mxu0 0.0
        %1794 = vmatpush1.msra.mxu0 0.0
        %1795 = vmatprep.subr.mxu0 0.0
        %1796 = vmatpush1.msra.mxu0 0.0
        %1797 = vmatprep.subr.mxu0 0.0
        %1798 = vmatpush1.msra.mxu0 0.0
        %1799 = vmatprep.subr.mxu0 0.0
        %1800 = vmatpush1.msra.mxu0 0.0
        %1801 = vmatprep.subr.mxu0 0.0
        %1802 = vmatpush1.msra.mxu0 0.0
        %1803 = vmatprep.subr.mxu0 0.0
        %1804 = vmatpush1.msra.mxu0 0.0
        %1805 = vmatprep.subr.mxu0 0.0
        %1806 = vmatpush1.msra.mxu0 0.0
        %1807 = vmatprep.subr.mxu0 0.0
        %1808 = vmatpush1.msra.mxu0 0.0
        %1809 = vmatprep.subr.mxu0 0.0
        %1810 = vmatpush1.msra.mxu0 0.0
        %1811 = vmatprep.subr.mxu0 0.0
        %1812 = vmatpush1.msra.mxu0 0.0
        %1813 = vmatprep.subr.mxu0 0.0
        %1814 = vmatpush1.msra.mxu0 0.0
        %1815 = vmatprep.subr.mxu0 0.0
        %1816 = vmatpush1.msra.mxu0 0.0
        %1817 = vmatprep.subr.mxu0 0.0
        %1818 = vmatpush1.msra.mxu0 0.0
        %1819 = vmatprep.subr.mxu0 0.0
        %1820 = vmatpush1.msra.mxu0 0.0
        %1821 = vmatprep.mubr.f32.mxu0 0.0
        %1822 = vmatmul.mubr.f32.gmra.mrb[0].mxu0 %v1755
        %v1823 = vpop.f32.mrb[0].mxu0
        %v1824 = vadd.f32 0.0, %v1823
        %v1825 = vpop.f32.mrb[0].mxu0
        %1826 = vdwg.mxu0
        %v1827 = vadd.f32 %v1743, %v1824
        %1828 = vrot.lane.b32.xlu0 %v1333, 121
        %v1829 = vpop.permute.xlu0 %1828
        %1831 = vrot.lane.b32.xlu0 %v1333, 57
        %v1832 = vpop.permute.xlu0 %1831
        %v1834 = vsel %vm1045, %v1829, %v1832
        %v1835 = vmul.f32 %v1834, %v1053
        %s1836 = scalar_lea.vmem %s7, 48
        %v1837 = vld [vmem:[%s1836] sm:$0xff]
        %v1839 = vsel %vm525, %v1837, 0
        %1841 = vmatprep.subr.mxu0 0.0
        %1842 = vmatpush1.msra.mxu0 %v1835
        %1843 = vmatprep.subr.mxu0 0.0
        %1844 = vmatpush1.msra.mxu0 0.0
        %1845 = vmatprep.subr.mxu0 0.0
        %1846 = vmatpush1.msra.mxu0 0.0
        %1847 = vmatprep.subr.mxu0 0.0
        %1848 = vmatpush1.msra.mxu0 0.0
        %1849 = vmatprep.subr.mxu0 0.0
        %1850 = vmatpush1.msra.mxu0 0.0
        %1851 = vmatprep.subr.mxu0 0.0
        %1852 = vmatpush1.msra.mxu0 0.0
        %1853 = vmatprep.subr.mxu0 0.0
        %1854 = vmatpush1.msra.mxu0 0.0
        %1855 = vmatprep.subr.mxu0 0.0
        %1856 = vmatpush1.msra.mxu0 0.0
        %1857 = vmatprep.subr.mxu0 0.0
        %1858 = vmatpush1.msra.mxu0 0.0
        %1859 = vmatprep.subr.mxu0 0.0
        %1860 = vmatpush1.msra.mxu0 0.0
        %1861 = vmatprep.subr.mxu0 0.0
        %1862 = vmatpush1.msra.mxu0 0.0
        %1863 = vmatprep.subr.mxu0 0.0
        %1864 = vmatpush1.msra.mxu0 0.0
        %1865 = vmatprep.subr.mxu0 0.0
        %1866 = vmatpush1.msra.mxu0 0.0
        %1867 = vmatprep.subr.mxu0 0.0
        %1868 = vmatpush1.msra.mxu0 0.0
        %1869 = vmatprep.subr.mxu0 0.0
        %1870 = vmatpush1.msra.mxu0 0.0
        %1871 = vmatprep.subr.mxu0 0.0
        %1872 = vmatpush1.msra.mxu0 0.0
        %1873 = vmatprep.subr.mxu0 0.0
        %1874 = vmatpush1.msra.mxu0 0.0
        %1875 = vmatprep.subr.mxu0 0.0
        %1876 = vmatpush1.msra.mxu0 0.0
        %1877 = vmatprep.subr.mxu0 0.0
        %1878 = vmatpush1.msra.mxu0 0.0
        %1879 = vmatprep.subr.mxu0 0.0
        %1880 = vmatpush1.msra.mxu0 0.0
        %1881 = vmatprep.subr.mxu0 0.0
        %1882 = vmatpush1.msra.mxu0 0.0
        %1883 = vmatprep.subr.mxu0 0.0
        %1884 = vmatpush1.msra.mxu0 0.0
        %1885 = vmatprep.subr.mxu0 0.0
        %1886 = vmatpush1.msra.mxu0 0.0
        %1887 = vmatprep.subr.mxu0 0.0
        %1888 = vmatpush1.msra.mxu0 0.0
        %1889 = vmatprep.subr.mxu0 0.0
        %1890 = vmatpush1.msra.mxu0 0.0
        %1891 = vmatprep.subr.mxu0 0.0
        %1892 = vmatpush1.msra.mxu0 0.0
        %1893 = vmatprep.subr.mxu0 0.0
        %1894 = vmatpush1.msra.mxu0 0.0
        %1895 = vmatprep.subr.mxu0 0.0
        %1896 = vmatpush1.msra.mxu0 0.0
        %1897 = vmatprep.subr.mxu0 0.0
        %1898 = vmatpush1.msra.mxu0 0.0
        %1899 = vmatprep.subr.mxu0 0.0
        %1900 = vmatpush1.msra.mxu0 0.0
        %1901 = vmatprep.subr.mxu0 0.0
        %1902 = vmatpush1.msra.mxu0 0.0
        %1903 = vmatprep.subr.mxu0 0.0
        %1904 = vmatpush1.msra.mxu0 0.0
        %1905 = vmatprep.mubr.f32.mxu0 0.0
        %1906 = vmatmul.mubr.f32.gmra.mrb[0].mxu0 %v1839
        %v1907 = vpop.f32.mrb[0].mxu0
        %v1908 = vadd.f32 0.0, %v1907
        %v1909 = vpop.f32.mrb[0].mxu0
        %1910 = vdwg.mxu0
        %v1911 = vadd.f32 %v1827, %v1908
        %1912 = vrot.lane.b32.xlu0 %v1333, 120
        %v1913 = vpop.permute.xlu0 %1912
        %1915 = vrot.lane.b32.xlu0 %v1333, 56
        %v1916 = vpop.permute.xlu0 %1915
        %v1918 = vsel %vm1138, %v1913, %v1916
        %v1919 = vmul.f32 %v1918, %v1146
        %s1920 = scalar_lea.vmem %s7, 56
        %v1921 = vld [vmem:[%s1920] sm:$0xff]
        %v1923 = vsel %vm525, %v1921, 0
        %1925 = vmatprep.subr.mxu0 0.0
        %1926 = vmatpush1.msra.mxu0 %v1919
        %1927 = vmatprep.subr.mxu0 0.0
        %1928 = vmatpush1.msra.mxu0 0.0
        %1929 = vmatprep.subr.mxu0 0.0
        %1930 = vmatpush1.msra.mxu0 0.0
        %1931 = vmatprep.subr.mxu0 0.0
        %1932 = vmatpush1.msra.mxu0 0.0
        %1933 = vmatprep.subr.mxu0 0.0
        %1934 = vmatpush1.msra.mxu0 0.0
        %1935 = vmatprep.subr.mxu0 0.0
        %1936 = vmatpush1.msra.mxu0 0.0
        %1937 = vmatprep.subr.mxu0 0.0
        %1938 = vmatpush1.msra.mxu0 0.0
        %1939 = vmatprep.subr.mxu0 0.0
        %1940 = vmatpush1.msra.mxu0 0.0
        %1941 = vmatprep.subr.mxu0 0.0
        %1942 = vmatpush1.msra.mxu0 0.0
        %1943 = vmatprep.subr.mxu0 0.0
        %1944 = vmatpush1.msra.mxu0 0.0
        %1945 = vmatprep.subr.mxu0 0.0
        %1946 = vmatpush1.msra.mxu0 0.0
        %1947 = vmatprep.subr.mxu0 0.0
        %1948 = vmatpush1.msra.mxu0 0.0
        %1949 = vmatprep.subr.mxu0 0.0
        %1950 = vmatpush1.msra.mxu0 0.0
        %1951 = vmatprep.subr.mxu0 0.0
        %1952 = vmatpush1.msra.mxu0 0.0
        %1953 = vmatprep.subr.mxu0 0.0
        %1954 = vmatpush1.msra.mxu0 0.0
        %1955 = vmatprep.subr.mxu0 0.0
        %1956 = vmatpush1.msra.mxu0 0.0
        %1957 = vmatprep.subr.mxu0 0.0
        %1958 = vmatpush1.msra.mxu0 0.0
        %1959 = vmatprep.subr.mxu0 0.0
        %1960 = vmatpush1.msra.mxu0 0.0
        %1961 = vmatprep.subr.mxu0 0.0
        %1962 = vmatpush1.msra.mxu0 0.0
        %1963 = vmatprep.subr.mxu0 0.0
        %1964 = vmatpush1.msra.mxu0 0.0
        %1965 = vmatprep.subr.mxu0 0.0
        %1966 = vmatpush1.msra.mxu0 0.0
        %1967 = vmatprep.subr.mxu0 0.0
        %1968 = vmatpush1.msra.mxu0 0.0
        %1969 = vmatprep.subr.mxu0 0.0
        %1970 = vmatpush1.msra.mxu0 0.0
        %1971 = vmatprep.subr.mxu0 0.0
        %1972 = vmatpush1.msra.mxu0 0.0
        %1973 = vmatprep.subr.mxu0 0.0
        %1974 = vmatpush1.msra.mxu0 0.0
        %1975 = vmatprep.subr.mxu0 0.0
        %1976 = vmatpush1.msra.mxu0 0.0
        %1977 = vmatprep.subr.mxu0 0.0
        %1978 = vmatpush1.msra.mxu0 0.0
        %1979 = vmatprep.subr.mxu0 0.0
        %1980 = vmatpush1.msra.mxu0 0.0
        %1981 = vmatprep.subr.mxu0 0.0
        %1982 = vmatpush1.msra.mxu0 0.0
        %1983 = vmatprep.subr.mxu0 0.0
        %1984 = vmatpush1.msra.mxu0 0.0
        %1985 = vmatprep.subr.mxu0 0.0
        %1986 = vmatpush1.msra.mxu0 0.0
        %1987 = vmatprep.subr.mxu0 0.0
        %1988 = vmatpush1.msra.mxu0 0.0
        %1989 = vmatprep.mubr.f32.mxu0 0.0
        %1990 = vmatmul.mubr.f32.gmra.mrb[0].mxu0 %v1923
        %v1991 = vpop.f32.mrb[0].mxu0
        %v1992 = vadd.f32 0.0, %v1991
        %v1993 = vpop.f32.mrb[0].mxu0
        %1994 = vdwg.mxu0
        %v1995 = vadd.f32 %v1911, %v1992
        %1996 = vrot.lane.b32.xlu0 %v1333, 119
        %v1997 = vpop.permute.xlu0 %1996
        %1999 = vrot.lane.b32.xlu0 %v1333, 55
        %v2000 = vpop.permute.xlu0 %1999
        %v2002 = vsel %vm1231, %v1997, %v2000
        %v2003 = vmul.f32 %v2002, %v1239
        %s2004 = scalar_lea.vmem %s7, 64
        %v2005 = vld [vmem:[%s2004] sm:$0xff]
        %v2007 = vsel %vm525, %v2005, 0
        %2009 = vmatprep.subr.mxu0 0.0
        %2010 = vmatpush1.msra.mxu0 %v2003
        %2011 = vmatprep.subr.mxu0 0.0
        %2012 = vmatpush1.msra.mxu0 0.0
        %2013 = vmatprep.subr.mxu0 0.0
        %2014 = vmatpush1.msra.mxu0 0.0
        %2015 = vmatprep.subr.mxu0 0.0
        %2016 = vmatpush1.msra.mxu0 0.0
        %2017 = vmatprep.subr.mxu0 0.0
        %2018 = vmatpush1.msra.mxu0 0.0
        %2019 = vmatprep.subr.mxu0 0.0
        %2020 = vmatpush1.msra.mxu0 0.0
        %2021 = vmatprep.subr.mxu0 0.0
        %2022 = vmatpush1.msra.mxu0 0.0
        %2023 = vmatprep.subr.mxu0 0.0
        %2024 = vmatpush1.msra.mxu0 0.0
        %2025 = vmatprep.subr.mxu0 0.0
        %2026 = vmatpush1.msra.mxu0 0.0
        %2027 = vmatprep.subr.mxu0 0.0
        %2028 = vmatpush1.msra.mxu0 0.0
        %2029 = vmatprep.subr.mxu0 0.0
        %2030 = vmatpush1.msra.mxu0 0.0
        %2031 = vmatprep.subr.mxu0 0.0
        %2032 = vmatpush1.msra.mxu0 0.0
        %2033 = vmatprep.subr.mxu0 0.0
        %2034 = vmatpush1.msra.mxu0 0.0
        %2035 = vmatprep.subr.mxu0 0.0
        %2036 = vmatpush1.msra.mxu0 0.0
        %2037 = vmatprep.subr.mxu0 0.0
        %2038 = vmatpush1.msra.mxu0 0.0
        %2039 = vmatprep.subr.mxu0 0.0
        %2040 = vmatpush1.msra.mxu0 0.0
        %2041 = vmatprep.subr.mxu0 0.0
        %2042 = vmatpush1.msra.mxu0 0.0
        %2043 = vmatprep.subr.mxu0 0.0
        %2044 = vmatpush1.msra.mxu0 0.0
        %2045 = vmatprep.subr.mxu0 0.0
        %2046 = vmatpush1.msra.mxu0 0.0
        %2047 = vmatprep.subr.mxu0 0.0
        %2048 = vmatpush1.msra.mxu0 0.0
        %2049 = vmatprep.subr.mxu0 0.0
        %2050 = vmatpush1.msra.mxu0 0.0
        %2051 = vmatprep.subr.mxu0 0.0
        %2052 = vmatpush1.msra.mxu0 0.0
        %2053 = vmatprep.subr.mxu0 0.0
        %2054 = vmatpush1.msra.mxu0 0.0
        %2055 = vmatprep.subr.mxu0 0.0
        %2056 = vmatpush1.msra.mxu0 0.0
        %2057 = vmatprep.subr.mxu0 0.0
        %2058 = vmatpush1.msra.mxu0 0.0
        %2059 = vmatprep.subr.mxu0 0.0
        %2060 = vmatpush1.msra.mxu0 0.0
        %2061 = vmatprep.subr.mxu0 0.0
        %2062 = vmatpush1.msra.mxu0 0.0
        %2063 = vmatprep.subr.mxu0 0.0
        %2064 = vmatpush1.msra.mxu0 0.0
        %2065 = vmatprep.subr.mxu0 0.0
        %2066 = vmatpush1.msra.mxu0 0.0
        %2067 = vmatprep.subr.mxu0 0.0
        %2068 = vmatpush1.msra.mxu0 0.0
        %2069 = vmatprep.subr.mxu0 0.0
        %2070 = vmatpush1.msra.mxu0 0.0
        %2071 = vmatprep.subr.mxu0 0.0
        %2072 = vmatpush1.msra.mxu0 0.0
        %2073 = vmatprep.mubr.f32.mxu0 0.0
        %2074 = vmatmul.mubr.f32.gmra.mrb[0].mxu0 %v2007
        %v2075 = vpop.f32.mrb[0].mxu0
        %v2076 = vadd.f32 0.0, %v2075
        %v2077 = vpop.f32.mrb[0].mxu0
        %2078 = vdwg.mxu0
        %v2079 = vadd.f32 %v1995, %v2076
        %v2080 = vld [vmem:[%s8] sm:$0xff]
        %2082 = vset.pattern.permute.xlu0 0
        %2083 = vperm.xlu0 %2082, %v2080
        %v2084 = vpop.permute.xlu0 %2083
        %v2086 = vadd.f32 %v2079, %v2084
        %v2087 = vld [vmem:[%s9] sm:$0xff]
        %vm2088 = vcmp.gt.f32.partialorder %v2086, 0.0
        %2090 = vset.pattern.permute.xlu0 0
        %2091 = vperm.xlu0 %2090, %v2087
        %v2092 = vpop.permute.xlu0 %2091
        %v2094 = vmul.f32 %v2092, %v2086
        %v2095 = vsel %vm2088, %v2086, %v2094
        %v2096 = vadd.f32 %v2095, %v500
        %vm2097 = vcmask 523264
        %2098 = vst.msk [vmem:[%s377] sm:$0xff] %vm2097, %v2096
        %s2099 = sand.u32 %s269, 1
        %s2100 = scalar_lea.sflag [#allocation3], %s2099
        %s2101 = sand.u32 %s269, 1
        %s2102 = smul.addr %s2101, 8
        %s2103 = scalar_lea.vmem [#allocation2], %s2102
        // Predicated region
        $region65: #{tpu_custom_call.1} parent=63 // pred_check
          %p2104 = pneg %p279
        $region66: #{tpu_custom_call.1} parent=63 // pred_check_branch
          %2106 = sbr.rel (%p2104) target = $region68
        $region67: #{tpu_custom_call.1} parent=63 // pred_region
          %s2108 = ssub.s32 128, 128
          %2109 = vsyncadd %s2100, %s2108
          %s2110 = smul.addr %s25, 128
          %s2111 = scalar_lea.hbm %s11, %s2110
          %s2113 = sshll.u32 %s2103, 4
          %s2114 = int_to_ptr.vmem [resolvable:$true] %s2113
          %2116 = dma.vmem_to_hbm [thread:$0]  %s2114, 128, %s2111, %s2100
        $region68: #{tpu_custom_call.1} parent=63 // pred_fallthru
          _
      $region64: #{tpu_custom_call.1} parent=5 // pred_fallthru
        _
      %p2117 = scmp.le.s32.totalorder 2, %s20
      // Predicated region
      $region69: #{tpu_custom_call.1} parent=5 // pred_check
        %p2118 = pneg %p2117
      $region70: #{tpu_custom_call.1} parent=5 // pred_check_branch
        %2120 = sbr.rel (%p2118) target = $region72
      $region71: #{tpu_custom_call.1} parent=5 // pred_region
        %s2121 = ssub.s32 %s20, 2
        // Predicated region
        $region73: #{tpu_custom_call.1} parent=71 // pred_check
          %p2122 = pneg %p285
        $region74: #{tpu_custom_call.1} parent=71 // pred_check_branch
          %2124 = sbr.rel (%p2122) target = $region76
        $region75: #{tpu_custom_call.1} parent=71 // pred_region
          %s2125 = sand.u32 %s270, 1
          %s2126 = scalar_lea.sflag [#allocation3], %s2125
          %s2127 = sand.u32 %s270, 1
          %s2128 = smul.addr %s2127, 8
          %s2129 = scalar_lea.vmem [#allocation2], %s2128
          %2130 = dma.done %s2126, 128
        $region76: #{tpu_custom_call.1} parent=71 // pred_fallthru
          _
      $region72: #{tpu_custom_call.1} parent=5 // pred_fallthru
        _
    $region6: #{tpu_custom_call.1} parent=1 // loop_footer
      %s24 = sadd.s32 1, %s20
    $region7: #{tpu_custom_call.1} parent=1 // loop_footer_branch
      %19 = sbr.rel target = $region3
    $region8: #{tpu_custom_call.1} parent=1 // loop_exit
      _
    %2131 = vsyncpa [#allocation3], 1
    %s2132 = scalar_lea.sflag [#allocation3], 1
    %2133 = vsyncpa %s2132, 1

</llo_original>
